<compile_context>
chip_gen: v6e
topology: v6e:2x2x1
jax: 0.10.0
libtpu: 0.0.40
codegen_flags: <defaults>
</compile_context>

<pallas_src>
import functools

import jax
import jax.numpy as jnp
from jax.experimental import pallas as pl
from jax.experimental.pallas import tpu as pltpu


def gru_generator_kernel(ids_ref, emb_ref, wih_ref, whh_ref, bih_ref,
                         bhh_ref, wf_ref, bf_ref, o_ref,
                         *, L, TB, H, V_IN, V_PAD):
    M = L * TB

    # ---- fused embedding lookup: one_hot(ids) @ emb_table  (MXU) ----
    ids = ids_ref[...]                                        # (M, 1) int32
    onehot = (jax.lax.broadcasted_iota(jnp.int32, (M, V_IN), 1)
              == ids).astype(jnp.float32)                     # (M, V_IN)
    x_emb = jnp.dot(onehot, emb_ref[...],
                    preferred_element_type=jnp.float32)       # (M, E)

    # ---- GRU input projection for all timesteps, kept in registers ----
    # rows are time-major: row = t*TB + b
    gx = jnp.dot(x_emb, wih_ref[...],
                 preferred_element_type=jnp.float32) + bih_ref[...]   # (M, 3H)

    whh = whh_ref[...]                                        # (H, 3H)
    wf = wf_ref[...]                                          # (H, V_PAD)
    bhh = jnp.broadcast_to(bhh_ref[...], (TB, 3 * H))         # hoisted broadcasts
    bf = jnp.broadcast_to(bf_ref[...], (TB, V_PAD))

    # ---- sequential recurrence, h carried in registers, static unroll ----
    h = jnp.zeros((TB, H), jnp.float32)                       # h0 = 0 (non-conditional)
    for t in range(L):                                        # static offsets everywhere
        gx_t = gx[t * TB:(t + 1) * TB, :]                     # (TB, 3H)
        gh = jnp.dot(h, whh, preferred_element_type=jnp.float32) + bhh
        rz = jax.nn.sigmoid(gx_t[:, :2 * H] + gh[:, :2 * H])  # fused r,z sigmoid
        r = rz[:, :H]
        z = rz[:, H:2 * H]
        n = jnp.tanh(gx_t[:, 2 * H:] + r * gh[:, 2 * H:])
        h = (1.0 - z) * n + z * h
        # fc2 per step (off the serial chain); lane-aligned 128-wide dense store.
        logits_t = jnp.dot(h, wf, preferred_element_type=jnp.float32) + bf
        o_ref[:, t * V_PAD:(t + 1) * V_PAD] = logits_t        # dropout == identity


def _two_tensorcores_per_chip() -> bool:
    try:
        kind = jax.devices()[0].device_kind.lower()
    except Exception:
        return False
    return any(k in kind for k in ("v7", "v4", "v5p"))


def surname_rnn_generator_forward(x_in, emb, w_ih, w_hh, b_ih, b_hh,
                                  w_fc, b_fc):
    """x_in: (B, L) int tokens. Weights in PyTorch layouts:
       emb (V_in, E), w_ih (3H, E), w_hh (3H, H), b_ih (3H,), b_hh (3H,),
       w_fc (V_out, H), b_fc (V_out,).  Returns (B, L, V_out) float32."""
    B, L = x_in.shape
    V_in, E = emb.shape
    H = w_hh.shape[1]
    V_out = w_fc.shape[0]
    V_pad = -(-V_out // 128) * 128                   # lane-dense output width

    # Batch-block size: pad B up to a sublane multiple, cap at 128.
    # On 2-TC chips split into >=2 blocks so the "parallel" grid axis shards
    # across TensorCores; on 1-TC chips keep one big block (grid is serial).
    B8 = -(-B // 8) * 8
    if _two_tensorcores_per_chip() and B8 >= 16:
        TB = min(128, -(-B8 // 16) * 8)              # ~B8/2, multiple of 8
    else:
        TB = min(128, B8)
    num_blocks = -(-B8 // TB)
    B_pad = num_blocks * TB
    M = L * TB

    # (B, L) tokens -> time-major, block-partitioned (num_blocks*L*TB, 1) ids.
    x_pad = jnp.zeros((B_pad, L), jnp.int32).at[:B].set(x_in.astype(jnp.int32))
    ids = x_pad.reshape(num_blocks, TB, L)
    ids = jnp.transpose(ids, (0, 2, 1)).reshape(num_blocks * M, 1)

    # Kernel-side weight layouts (one-time transposes / pads, outside the kernel).
    wih_t = jnp.transpose(w_ih, (1, 0))              # (E, 3H)
    whh_t = jnp.transpose(w_hh, (1, 0))              # (H, 3H)
    bih = b_ih.reshape(1, 3 * H)
    bhh = b_hh.reshape(1, 3 * H)
    wf_pad = jnp.zeros((H, V_pad), jnp.float32).at[:, :V_out].set(
        jnp.transpose(w_fc, (1, 0)))                 # (H, V_pad)
    bf_pad = jnp.zeros((1, V_pad), jnp.float32).at[:, :V_out].set(
        b_fc.reshape(1, V_out))

    kernel = functools.partial(gru_generator_kernel,
                               L=L, TB=TB, H=H, V_IN=V_in, V_PAD=V_pad)
    out = pl.pallas_call(
        kernel,
        out_shape=jax.ShapeDtypeStruct((B_pad, L * V_pad), jnp.float32),
        grid_spec=pltpu.PrefetchScalarGridSpec(
            num_scalar_prefetch=0,
            grid=(num_blocks,),
            in_specs=[
                pl.BlockSpec((M, 1), lambda g: (g, 0)),          # token ids
                pl.BlockSpec((V_in, E), lambda g: (0, 0)),       # embedding table
                pl.BlockSpec((E, 3 * H), lambda g: (0, 0)),      # W_ih^T
                pl.BlockSpec((H, 3 * H), lambda g: (0, 0)),      # W_hh^T
                pl.BlockSpec((1, 3 * H), lambda g: (0, 0)),      # b_ih
                pl.BlockSpec((1, 3 * H), lambda g: (0, 0)),      # b_hh
                pl.BlockSpec((H, V_pad), lambda g: (0, 0)),      # fc2 W^T (lane-padded)
                pl.BlockSpec((1, V_pad), lambda g: (0, 0)),      # fc2 b  (lane-padded)
            ],
            out_specs=pl.BlockSpec((TB, L * V_pad), lambda g: (g, 0)),
        ),
        compiler_params=pltpu.CompilerParams(
            dimension_semantics=("parallel",)),
    )(ids, emb, wih_t, whh_t, bih, bhh, wf_pad, bf_pad)

    # (B_pad, L*V_pad) is already batch-major: free reshape + slice, no transpose.
    out = out.reshape(B_pad, L, V_pad)
    return out[:B, :, :V_out]


def reference_forward(x_in, emb, w_ih, w_hh, b_ih, b_hh, w_fc, b_fc):
    """Pure-JAX reference of the same math (PyTorch GRU gate order r,z,n)."""
    x = emb[x_in]                                       # (B, L, E)
    B, L, _ = x.shape
    H = w_hh.shape[1]
    gx = jnp.einsum('ble,ge->blg', x, w_ih) + b_ih      # (B, L, 3H)

    def step(h, gx_t):
        gh = h @ w_hh.T + b_hh
        r = jax.nn.sigmoid(gx_t[:, :H] + gh[:, :H])
        z = jax.nn.sigmoid(gx_t[:, H:2 * H] + gh[:, H:2 * H])
        n = jnp.tanh(gx_t[:, 2 * H:] + r * gh[:, 2 * H:])
        h_new = (1.0 - z) * n + z * h
        return h_new, h_new

    h0 = jnp.zeros((B, H), jnp.float32)
    _, ys = jax.lax.scan(step, h0, jnp.swapaxes(gx, 0, 1))   # (L, B, H)
    y = jnp.swapaxes(ys, 0, 1)                               # (B, L, H)
    return jnp.einsum('blh,vh->blv', y, w_fc) + b_fc


if __name__ == "__main__":
    # Small shapes consistent with the module:
    #   num_features = vocab_size = 50, embedding_dim = 32,
    #   rnn_hidden_size = 32, batch = 2, seq = 8.
    B, L = 2, 8
    VOCAB, E, H = 50, 32, 32

    key = jax.random.PRNGKey(0)
    ks = jax.random.split(key, 8)

    emb = jax.random.normal(ks[0], (VOCAB, E), jnp.float32) * 0.1
    w_ih = jax.random.normal(ks[1], (3 * H, E), jnp.float32) * 0.1   # [r|z|n]
    w_hh = jax.random.normal(ks[2], (3 * H, H), jnp.float32) * 0.1
    b_ih = jax.random.normal(ks[3], (3 * H,), jnp.float32) * 0.1
    b_hh = jax.random.normal(ks[4], (3 * H,), jnp.float32) * 0.1
    w_fc = jax.random.normal(ks[5], (VOCAB, H), jnp.float32) * 0.1   # fc2
    b_fc = jax.random.normal(ks[6], (VOCAB,), jnp.float32) * 0.1

    x_in = jax.random.randint(ks[7], (B, L), 0, VOCAB, dtype=jnp.int32)

    logits = surname_rnn_generator_forward(
        x_in, emb, w_ih, w_hh, b_ih, b_hh, w_fc, b_fc)
    logits = jax.block_until_ready(logits)

    ref = reference_forward(x_in, emb, w_ih, w_hh, b_ih, b_hh, w_fc, b_fc)
    assert logits.shape == (B, L, VOCAB)
    err = jnp.max(jnp.abs(logits - ref))
    assert jnp.allclose(logits, ref, atol=1e-4, rtol=1e-4), f"max abs err={err}"

    print("KERNEL_OK")
</pallas_src>

<mosaic_0001>
module attributes {stable_mosaic.version = 11 : i64} {
  func.func @gru_generator_kernel(%arg0: i32, %arg1: memref<64x1xi32, #tpu.memory_space<vmem>>, %arg2: memref<50x32xf32, #tpu.memory_space<vmem>>, %arg3: memref<32x96xf32, #tpu.memory_space<vmem>>, %arg4: memref<32x96xf32, #tpu.memory_space<vmem>>, %arg5: memref<1x96xf32, #tpu.memory_space<vmem>>, %arg6: memref<1x96xf32, #tpu.memory_space<vmem>>, %arg7: memref<32x128xf32, #tpu.memory_space<vmem>>, %arg8: memref<1x128xf32, #tpu.memory_space<vmem>>, %arg9: memref<8x1024xf32, #tpu.memory_space<vmem>>) attributes {dimension_semantics = [#tpu.dimension_semantics<parallel>], iteration_bounds = array<i64: 1>, scalar_prefetch = 0 : i64, scratch_operands = 0 : i64, tpu.core_type = #tpu.core_type<tc>, window_params = [{transform_indices = @transform_0, window_bounds = array<i64: 64, 1>}, {pipeline_mode = #tpu.pipeline_mode<synchronous>, transform_indices = @transform_1, window_bounds = array<i64: 50, 32>}, {pipeline_mode = #tpu.pipeline_mode<synchronous>, transform_indices = @transform_2, window_bounds = array<i64: 32, 96>}, {pipeline_mode = #tpu.pipeline_mode<synchronous>, transform_indices = @transform_3, window_bounds = array<i64: 32, 96>}, {pipeline_mode = #tpu.pipeline_mode<synchronous>, transform_indices = @transform_4, window_bounds = array<i64: 1, 96>}, {pipeline_mode = #tpu.pipeline_mode<synchronous>, transform_indices = @transform_5, window_bounds = array<i64: 1, 96>}, {pipeline_mode = #tpu.pipeline_mode<synchronous>, transform_indices = @transform_6, window_bounds = array<i64: 32, 128>}, {pipeline_mode = #tpu.pipeline_mode<synchronous>, transform_indices = @transform_7, window_bounds = array<i64: 1, 128>}, {transform_indices = @transform_8, window_bounds = array<i64: 8, 1024>}]} {
    %c0 = arith.constant 0 : index
    %c0_0 = arith.constant 0 : index
    %0 = vector.load %arg1[%c0, %c0_0] : memref<64x1xi32, #tpu.memory_space<vmem>>, vector<64x1xi32>
    %1 = tpu.iota {dimensions = array<i32: 1>} : vector<64x50xi32>
    %2 = vector.broadcast %0 : vector<64x1xi32> to vector<64x50xi32>
    %3 = arith.cmpi eq, %1, %2 : vector<64x50xi32>
    %4 = arith.extui %3 : vector<64x50xi1> to vector<64x50xi32>
    %5 = arith.sitofp %4 : vector<64x50xi32> to vector<64x50xf32>
    %c0_1 = arith.constant 0 : index
    %c0_2 = arith.constant 0 : index
    %6 = vector.load %arg2[%c0_1, %c0_2] : memref<50x32xf32, #tpu.memory_space<vmem>>, vector<50x32xf32>
    %cst = arith.constant dense<0.000000e+00> : vector<64x32xf32>
    %7 = tpu.matmul %5, %6, %cst {dimension_numbers = #tpu.dot_dimension_numbers<[1], [0], [0], [1], [0, 0, 1, 1], [], []>} : vector<64x50xf32>, vector<50x32xf32>, vector<64x32xf32> -> vector<64x32xf32>
    %c0_3 = arith.constant 0 : index
    %c0_4 = arith.constant 0 : index
    %8 = vector.load %arg3[%c0_3, %c0_4] : memref<32x96xf32, #tpu.memory_space<vmem>>, vector<32x96xf32>
    %cst_5 = arith.constant dense<0.000000e+00> : vector<64x96xf32>
    %9 = tpu.matmul %7, %8, %cst_5 {dimension_numbers = #tpu.dot_dimension_numbers<[1], [0], [0], [1], [0, 0, 1, 1], [], []>} : vector<64x32xf32>, vector<32x96xf32>, vector<64x96xf32> -> vector<64x96xf32>
    %c0_6 = arith.constant 0 : index
    %c0_7 = arith.constant 0 : index
    %10 = vector.load %arg5[%c0_6, %c0_7] : memref<1x96xf32, #tpu.memory_space<vmem>>, vector<1x96xf32>
    %11 = vector.broadcast %10 : vector<1x96xf32> to vector<64x96xf32>
    %12 = arith.addf %9, %11 : vector<64x96xf32>
    %c0_8 = arith.constant 0 : index
    %c0_9 = arith.constant 0 : index
    %13 = vector.load %arg4[%c0_8, %c0_9] : memref<32x96xf32, #tpu.memory_space<vmem>>, vector<32x96xf32>
    %c0_10 = arith.constant 0 : index
    %c0_11 = arith.constant 0 : index
    %14 = vector.load %arg7[%c0_10, %c0_11] : memref<32x128xf32, #tpu.memory_space<vmem>>, vector<32x128xf32>
    %c0_12 = arith.constant 0 : index
    %c0_13 = arith.constant 0 : index
    %15 = vector.load %arg6[%c0_12, %c0_13] : memref<1x96xf32, #tpu.memory_space<vmem>>, vector<1x96xf32>
    %16 = vector.shape_cast %15 : vector<1x96xf32> to vector<1x96xf32>
    %17 = vector.broadcast %16 : vector<1x96xf32> to vector<8x96xf32>
    %c0_14 = arith.constant 0 : index
    %c0_15 = arith.constant 0 : index
    %18 = vector.load %arg8[%c0_14, %c0_15] : memref<1x128xf32, #tpu.memory_space<vmem>>, vector<1x128xf32>
    %19 = vector.shape_cast %18 : vector<1x128xf32> to vector<1x128xf32>
    %20 = vector.broadcast %19 : vector<1x128xf32> to vector<8x128xf32>
    %cst_16 = arith.constant 0.000000e+00 : f32
    %21 = vector.broadcast %cst_16 : f32 to vector<8x32xf32>
    %22 = vector.extract_strided_slice %12 {offsets = [0, 0], sizes = [8, 96], strides = [1, 1]} : vector<64x96xf32> to vector<8x96xf32>
    %cst_17 = arith.constant dense<0.000000e+00> : vector<8x96xf32>
    %23 = tpu.matmul %21, %13, %cst_17 {dimension_numbers = #tpu.dot_dimension_numbers<[1], [0], [0], [1], [0, 0, 1, 1], [], []>} : vector<8x32xf32>, vector<32x96xf32>, vector<8x96xf32> -> vector<8x96xf32>
    %24 = arith.addf %23, %17 : vector<8x96xf32>
    %25 = vector.extract_strided_slice %22 {offsets = [0, 0], sizes = [8, 64], strides = [1, 1]} : vector<8x96xf32> to vector<8x64xf32>
    %26 = vector.extract_strided_slice %24 {offsets = [0, 0], sizes = [8, 64], strides = [1, 1]} : vector<8x96xf32> to vector<8x64xf32>
    %27 = arith.addf %25, %26 : vector<8x64xf32>
    %28 = arith.negf %27 : vector<8x64xf32>
    %29 = math.exp %28 : vector<8x64xf32>
    %cst_18 = arith.constant 1.000000e+00 : f32
    %30 = vector.broadcast %cst_18 : f32 to vector<8x64xf32>
    %31 = arith.addf %30, %29 : vector<8x64xf32>
    %32 = arith.divf %30, %31 : vector<8x64xf32>
    %33 = vector.extract_strided_slice %32 {offsets = [0, 0], sizes = [8, 32], strides = [1, 1]} : vector<8x64xf32> to vector<8x32xf32>
    %34 = vector.extract_strided_slice %32 {offsets = [0, 32], sizes = [8, 32], strides = [1, 1]} : vector<8x64xf32> to vector<8x32xf32>
    %35 = vector.extract_strided_slice %22 {offsets = [0, 64], sizes = [8, 32], strides = [1, 1]} : vector<8x96xf32> to vector<8x32xf32>
    %36 = vector.extract_strided_slice %24 {offsets = [0, 64], sizes = [8, 32], strides = [1, 1]} : vector<8x96xf32> to vector<8x32xf32>
    %37 = arith.mulf %33, %36 : vector<8x32xf32>
    %38 = arith.addf %35, %37 : vector<8x32xf32>
    %39 = math.tanh %38 : vector<8x32xf32>
    %cst_19 = arith.constant 1.000000e+00 : f32
    %40 = vector.broadcast %cst_19 : f32 to vector<8x32xf32>
    %41 = arith.subf %40, %34 : vector<8x32xf32>
    %42 = arith.mulf %41, %39 : vector<8x32xf32>
    %43 = arith.mulf %34, %21 : vector<8x32xf32>
    %44 = arith.addf %42, %43 : vector<8x32xf32>
    %cst_20 = arith.constant dense<0.000000e+00> : vector<8x128xf32>
    %45 = tpu.matmul %44, %14, %cst_20 {dimension_numbers = #tpu.dot_dimension_numbers<[1], [0], [0], [1], [0, 0, 1, 1], [], []>} : vector<8x32xf32>, vector<32x128xf32>, vector<8x128xf32> -> vector<8x128xf32>
    %46 = arith.addf %45, %20 : vector<8x128xf32>
    %c0_21 = arith.constant 0 : index
    %c0_22 = arith.constant 0 : index
    %47 = vector.load %arg9[%c0_21, %c0_22] : memref<8x1024xf32, #tpu.memory_space<vmem>>, vector<8x128xf32>
    tpu.vector_store %arg9[%c0_21, %c0_22], %46 {strides = array<i32>} : memref<8x1024xf32, #tpu.memory_space<vmem>>, vector<8x128xf32>,
    %48 = vector.extract_strided_slice %12 {offsets = [8, 0], sizes = [8, 96], strides = [1, 1]} : vector<64x96xf32> to vector<8x96xf32>
    %cst_23 = arith.constant dense<0.000000e+00> : vector<8x96xf32>
    %49 = tpu.matmul %44, %13, %cst_23 {dimension_numbers = #tpu.dot_dimension_numbers<[1], [0], [0], [1], [0, 0, 1, 1], [], []>} : vector<8x32xf32>, vector<32x96xf32>, vector<8x96xf32> -> vector<8x96xf32>
    %50 = arith.addf %49, %17 : vector<8x96xf32>
    %51 = vector.extract_strided_slice %48 {offsets = [0, 0], sizes = [8, 64], strides = [1, 1]} : vector<8x96xf32> to vector<8x64xf32>
    %52 = vector.extract_strided_slice %50 {offsets = [0, 0], sizes = [8, 64], strides = [1, 1]} : vector<8x96xf32> to vector<8x64xf32>
    %53 = arith.addf %51, %52 : vector<8x64xf32>
    %54 = arith.negf %53 : vector<8x64xf32>
    %55 = math.exp %54 : vector<8x64xf32>
    %cst_24 = arith.constant 1.000000e+00 : f32
    %56 = vector.broadcast %cst_24 : f32 to vector<8x64xf32>
    %57 = arith.addf %56, %55 : vector<8x64xf32>
    %58 = arith.divf %56, %57 : vector<8x64xf32>
    %59 = vector.extract_strided_slice %58 {offsets = [0, 0], sizes = [8, 32], strides = [1, 1]} : vector<8x64xf32> to vector<8x32xf32>
    %60 = vector.extract_strided_slice %58 {offsets = [0, 32], sizes = [8, 32], strides = [1, 1]} : vector<8x64xf32> to vector<8x32xf32>
    %61 = vector.extract_strided_slice %48 {offsets = [0, 64], sizes = [8, 32], strides = [1, 1]} : vector<8x96xf32> to vector<8x32xf32>
    %62 = vector.extract_strided_slice %50 {offsets = [0, 64], sizes = [8, 32], strides = [1, 1]} : vector<8x96xf32> to vector<8x32xf32>
    %63 = arith.mulf %59, %62 : vector<8x32xf32>
    %64 = arith.addf %61, %63 : vector<8x32xf32>
    %65 = math.tanh %64 : vector<8x32xf32>
    %cst_25 = arith.constant 1.000000e+00 : f32
    %66 = vector.broadcast %cst_25 : f32 to vector<8x32xf32>
    %67 = arith.subf %66, %60 : vector<8x32xf32>
    %68 = arith.mulf %67, %65 : vector<8x32xf32>
    %69 = arith.mulf %60, %44 : vector<8x32xf32>
    %70 = arith.addf %68, %69 : vector<8x32xf32>
    %cst_26 = arith.constant dense<0.000000e+00> : vector<8x128xf32>
    %71 = tpu.matmul %70, %14, %cst_26 {dimension_numbers = #tpu.dot_dimension_numbers<[1], [0], [0], [1], [0, 0, 1, 1], [], []>} : vector<8x32xf32>, vector<32x128xf32>, vector<8x128xf32> -> vector<8x128xf32>
    %72 = arith.addf %71, %20 : vector<8x128xf32>
    %c0_27 = arith.constant 0 : index
    %c128 = arith.constant 128 : index
    %73 = vector.load %arg9[%c0_27, %c128] : memref<8x1024xf32, #tpu.memory_space<vmem>>, vector<8x128xf32>
    tpu.vector_store %arg9[%c0_27, %c128], %72 {strides = array<i32>} : memref<8x1024xf32, #tpu.memory_space<vmem>>, vector<8x128xf32>,
    %74 = vector.extract_strided_slice %12 {offsets = [16, 0], sizes = [8, 96], strides = [1, 1]} : vector<64x96xf32> to vector<8x96xf32>
    %cst_28 = arith.constant dense<0.000000e+00> : vector<8x96xf32>
    %75 = tpu.matmul %70, %13, %cst_28 {dimension_numbers = #tpu.dot_dimension_numbers<[1], [0], [0], [1], [0, 0, 1, 1], [], []>} : vector<8x32xf32>, vector<32x96xf32>, vector<8x96xf32> -> vector<8x96xf32>
    %76 = arith.addf %75, %17 : vector<8x96xf32>
    %77 = vector.extract_strided_slice %74 {offsets = [0, 0], sizes = [8, 64], strides = [1, 1]} : vector<8x96xf32> to vector<8x64xf32>
    %78 = vector.extract_strided_slice %76 {offsets = [0, 0], sizes = [8, 64], strides = [1, 1]} : vector<8x96xf32> to vector<8x64xf32>
    %79 = arith.addf %77, %78 : vector<8x64xf32>
    %80 = arith.negf %79 : vector<8x64xf32>
    %81 = math.exp %80 : vector<8x64xf32>
    %cst_29 = arith.constant 1.000000e+00 : f32
    %82 = vector.broadcast %cst_29 : f32 to vector<8x64xf32>
    %83 = arith.addf %82, %81 : vector<8x64xf32>
    %84 = arith.divf %82, %83 : vector<8x64xf32>
    %85 = vector.extract_strided_slice %84 {offsets = [0, 0], sizes = [8, 32], strides = [1, 1]} : vector<8x64xf32> to vector<8x32xf32>
    %86 = vector.extract_strided_slice %84 {offsets = [0, 32], sizes = [8, 32], strides = [1, 1]} : vector<8x64xf32> to vector<8x32xf32>
    %87 = vector.extract_strided_slice %74 {offsets = [0, 64], sizes = [8, 32], strides = [1, 1]} : vector<8x96xf32> to vector<8x32xf32>
    %88 = vector.extract_strided_slice %76 {offsets = [0, 64], sizes = [8, 32], strides = [1, 1]} : vector<8x96xf32> to vector<8x32xf32>
    %89 = arith.mulf %85, %88 : vector<8x32xf32>
    %90 = arith.addf %87, %89 : vector<8x32xf32>
    %91 = math.tanh %90 : vector<8x32xf32>
    %cst_30 = arith.constant 1.000000e+00 : f32
    %92 = vector.broadcast %cst_30 : f32 to vector<8x32xf32>
    %93 = arith.subf %92, %86 : vector<8x32xf32>
    %94 = arith.mulf %93, %91 : vector<8x32xf32>
    %95 = arith.mulf %86, %70 : vector<8x32xf32>
    %96 = arith.addf %94, %95 : vector<8x32xf32>
    %cst_31 = arith.constant dense<0.000000e+00> : vector<8x128xf32>
    %97 = tpu.matmul %96, %14, %cst_31 {dimension_numbers = #tpu.dot_dimension_numbers<[1], [0], [0], [1], [0, 0, 1, 1], [], []>} : vector<8x32xf32>, vector<32x128xf32>, vector<8x128xf32> -> vector<8x128xf32>
    %98 = arith.addf %97, %20 : vector<8x128xf32>
    %c0_32 = arith.constant 0 : index
    %c256 = arith.constant 256 : index
    %99 = vector.load %arg9[%c0_32, %c256] : memref<8x1024xf32, #tpu.memory_space<vmem>>, vector<8x128xf32>
    tpu.vector_store %arg9[%c0_32, %c256], %98 {strides = array<i32>} : memref<8x1024xf32, #tpu.memory_space<vmem>>, vector<8x128xf32>,
    %100 = vector.extract_strided_slice %12 {offsets = [24, 0], sizes = [8, 96], strides = [1, 1]} : vector<64x96xf32> to vector<8x96xf32>
    %cst_33 = arith.constant dense<0.000000e+00> : vector<8x96xf32>
    %101 = tpu.matmul %96, %13, %cst_33 {dimension_numbers = #tpu.dot_dimension_numbers<[1], [0], [0], [1], [0, 0, 1, 1], [], []>} : vector<8x32xf32>, vector<32x96xf32>, vector<8x96xf32> -> vector<8x96xf32>
    %102 = arith.addf %101, %17 : vector<8x96xf32>
    %103 = vector.extract_strided_slice %100 {offsets = [0, 0], sizes = [8, 64], strides = [1, 1]} : vector<8x96xf32> to vector<8x64xf32>
    %104 = vector.extract_strided_slice %102 {offsets = [0, 0], sizes = [8, 64], strides = [1, 1]} : vector<8x96xf32> to vector<8x64xf32>
    %105 = arith.addf %103, %104 : vector<8x64xf32>
    %106 = arith.negf %105 : vector<8x64xf32>
    %107 = math.exp %106 : vector<8x64xf32>
    %cst_34 = arith.constant 1.000000e+00 : f32
    %108 = vector.broadcast %cst_34 : f32 to vector<8x64xf32>
    %109 = arith.addf %108, %107 : vector<8x64xf32>
    %110 = arith.divf %108, %109 : vector<8x64xf32>
    %111 = vector.extract_strided_slice %110 {offsets = [0, 0], sizes = [8, 32], strides = [1, 1]} : vector<8x64xf32> to vector<8x32xf32>
    %112 = vector.extract_strided_slice %110 {offsets = [0, 32], sizes = [8, 32], strides = [1, 1]} : vector<8x64xf32> to vector<8x32xf32>
    %113 = vector.extract_strided_slice %100 {offsets = [0, 64], sizes = [8, 32], strides = [1, 1]} : vector<8x96xf32> to vector<8x32xf32>
    %114 = vector.extract_strided_slice %102 {offsets = [0, 64], sizes = [8, 32], strides = [1, 1]} : vector<8x96xf32> to vector<8x32xf32>
    %115 = arith.mulf %111, %114 : vector<8x32xf32>
    %116 = arith.addf %113, %115 : vector<8x32xf32>
    %117 = math.tanh %116 : vector<8x32xf32>
    %cst_35 = arith.constant 1.000000e+00 : f32
    %118 = vector.broadcast %cst_35 : f32 to vector<8x32xf32>
    %119 = arith.subf %118, %112 : vector<8x32xf32>
    %120 = arith.mulf %119, %117 : vector<8x32xf32>
    %121 = arith.mulf %112, %96 : vector<8x32xf32>
    %122 = arith.addf %120, %121 : vector<8x32xf32>
    %cst_36 = arith.constant dense<0.000000e+00> : vector<8x128xf32>
    %123 = tpu.matmul %122, %14, %cst_36 {dimension_numbers = #tpu.dot_dimension_numbers<[1], [0], [0], [1], [0, 0, 1, 1], [], []>} : vector<8x32xf32>, vector<32x128xf32>, vector<8x128xf32> -> vector<8x128xf32>
    %124 = arith.addf %123, %20 : vector<8x128xf32>
    %c0_37 = arith.constant 0 : index
    %c384 = arith.constant 384 : index
    %125 = vector.load %arg9[%c0_37, %c384] : memref<8x1024xf32, #tpu.memory_space<vmem>>, vector<8x128xf32>
    tpu.vector_store %arg9[%c0_37, %c384], %124 {strides = array<i32>} : memref<8x1024xf32, #tpu.memory_space<vmem>>, vector<8x128xf32>,
    %126 = vector.extract_strided_slice %12 {offsets = [32, 0], sizes = [8, 96], strides = [1, 1]} : vector<64x96xf32> to vector<8x96xf32>
    %cst_38 = arith.constant dense<0.000000e+00> : vector<8x96xf32>
    %127 = tpu.matmul %122, %13, %cst_38 {dimension_numbers = #tpu.dot_dimension_numbers<[1], [0], [0], [1], [0, 0, 1, 1], [], []>} : vector<8x32xf32>, vector<32x96xf32>, vector<8x96xf32> -> vector<8x96xf32>
    %128 = arith.addf %127, %17 : vector<8x96xf32>
    %129 = vector.extract_strided_slice %126 {offsets = [0, 0], sizes = [8, 64], strides = [1, 1]} : vector<8x96xf32> to vector<8x64xf32>
    %130 = vector.extract_strided_slice %128 {offsets = [0, 0], sizes = [8, 64], strides = [1, 1]} : vector<8x96xf32> to vector<8x64xf32>
    %131 = arith.addf %129, %130 : vector<8x64xf32>
    %132 = arith.negf %131 : vector<8x64xf32>
    %133 = math.exp %132 : vector<8x64xf32>
    %cst_39 = arith.constant 1.000000e+00 : f32
    %134 = vector.broadcast %cst_39 : f32 to vector<8x64xf32>
    %135 = arith.addf %134, %133 : vector<8x64xf32>
    %136 = arith.divf %134, %135 : vector<8x64xf32>
    %137 = vector.extract_strided_slice %136 {offsets = [0, 0], sizes = [8, 32], strides = [1, 1]} : vector<8x64xf32> to vector<8x32xf32>
    %138 = vector.extract_strided_slice %136 {offsets = [0, 32], sizes = [8, 32], strides = [1, 1]} : vector<8x64xf32> to vector<8x32xf32>
    %139 = vector.extract_strided_slice %126 {offsets = [0, 64], sizes = [8, 32], strides = [1, 1]} : vector<8x96xf32> to vector<8x32xf32>
    %140 = vector.extract_strided_slice %128 {offsets = [0, 64], sizes = [8, 32], strides = [1, 1]} : vector<8x96xf32> to vector<8x32xf32>
    %141 = arith.mulf %137, %140 : vector<8x32xf32>
    %142 = arith.addf %139, %141 : vector<8x32xf32>
    %143 = math.tanh %142 : vector<8x32xf32>
    %cst_40 = arith.constant 1.000000e+00 : f32
    %144 = vector.broadcast %cst_40 : f32 to vector<8x32xf32>
    %145 = arith.subf %144, %138 : vector<8x32xf32>
    %146 = arith.mulf %145, %143 : vector<8x32xf32>
    %147 = arith.mulf %138, %122 : vector<8x32xf32>
    %148 = arith.addf %146, %147 : vector<8x32xf32>
    %cst_41 = arith.constant dense<0.000000e+00> : vector<8x128xf32>
    %149 = tpu.matmul %148, %14, %cst_41 {dimension_numbers = #tpu.dot_dimension_numbers<[1], [0], [0], [1], [0, 0, 1, 1], [], []>} : vector<8x32xf32>, vector<32x128xf32>, vector<8x128xf32> -> vector<8x128xf32>
    %150 = arith.addf %149, %20 : vector<8x128xf32>
    %c0_42 = arith.constant 0 : index
    %c512 = arith.constant 512 : index
    %151 = vector.load %arg9[%c0_42, %c512] : memref<8x1024xf32, #tpu.memory_space<vmem>>, vector<8x128xf32>
    tpu.vector_store %arg9[%c0_42, %c512], %150 {strides = array<i32>} : memref<8x1024xf32, #tpu.memory_space<vmem>>, vector<8x128xf32>,
    %152 = vector.extract_strided_slice %12 {offsets = [40, 0], sizes = [8, 96], strides = [1, 1]} : vector<64x96xf32> to vector<8x96xf32>
    %cst_43 = arith.constant dense<0.000000e+00> : vector<8x96xf32>
    %153 = tpu.matmul %148, %13, %cst_43 {dimension_numbers = #tpu.dot_dimension_numbers<[1], [0], [0], [1], [0, 0, 1, 1], [], []>} : vector<8x32xf32>, vector<32x96xf32>, vector<8x96xf32> -> vector<8x96xf32>
    %154 = arith.addf %153, %17 : vector<8x96xf32>
    %155 = vector.extract_strided_slice %152 {offsets = [0, 0], sizes = [8, 64], strides = [1, 1]} : vector<8x96xf32> to vector<8x64xf32>
    %156 = vector.extract_strided_slice %154 {offsets = [0, 0], sizes = [8, 64], strides = [1, 1]} : vector<8x96xf32> to vector<8x64xf32>
    %157 = arith.addf %155, %156 : vector<8x64xf32>
    %158 = arith.negf %157 : vector<8x64xf32>
    %159 = math.exp %158 : vector<8x64xf32>
    %cst_44 = arith.constant 1.000000e+00 : f32
    %160 = vector.broadcast %cst_44 : f32 to vector<8x64xf32>
    %161 = arith.addf %160, %159 : vector<8x64xf32>
    %162 = arith.divf %160, %161 : vector<8x64xf32>
    %163 = vector.extract_strided_slice %162 {offsets = [0, 0], sizes = [8, 32], strides = [1, 1]} : vector<8x64xf32> to vector<8x32xf32>
    %164 = vector.extract_strided_slice %162 {offsets = [0, 32], sizes = [8, 32], strides = [1, 1]} : vector<8x64xf32> to vector<8x32xf32>
    %165 = vector.extract_strided_slice %152 {offsets = [0, 64], sizes = [8, 32], strides = [1, 1]} : vector<8x96xf32> to vector<8x32xf32>
    %166 = vector.extract_strided_slice %154 {offsets = [0, 64], sizes = [8, 32], strides = [1, 1]} : vector<8x96xf32> to vector<8x32xf32>
    %167 = arith.mulf %163, %166 : vector<8x32xf32>
    %168 = arith.addf %165, %167 : vector<8x32xf32>
    %169 = math.tanh %168 : vector<8x32xf32>
    %cst_45 = arith.constant 1.000000e+00 : f32
    %170 = vector.broadcast %cst_45 : f32 to vector<8x32xf32>
    %171 = arith.subf %170, %164 : vector<8x32xf32>
    %172 = arith.mulf %171, %169 : vector<8x32xf32>
    %173 = arith.mulf %164, %148 : vector<8x32xf32>
    %174 = arith.addf %172, %173 : vector<8x32xf32>
    %cst_46 = arith.constant dense<0.000000e+00> : vector<8x128xf32>
    %175 = tpu.matmul %174, %14, %cst_46 {dimension_numbers = #tpu.dot_dimension_numbers<[1], [0], [0], [1], [0, 0, 1, 1], [], []>} : vector<8x32xf32>, vector<32x128xf32>, vector<8x128xf32> -> vector<8x128xf32>
    %176 = arith.addf %175, %20 : vector<8x128xf32>
    %c0_47 = arith.constant 0 : index
    %c640 = arith.constant 640 : index
    %177 = vector.load %arg9[%c0_47, %c640] : memref<8x1024xf32, #tpu.memory_space<vmem>>, vector<8x128xf32>
    tpu.vector_store %arg9[%c0_47, %c640], %176 {strides = array<i32>} : memref<8x1024xf32, #tpu.memory_space<vmem>>, vector<8x128xf32>,
    %178 = vector.extract_strided_slice %12 {offsets = [48, 0], sizes = [8, 96], strides = [1, 1]} : vector<64x96xf32> to vector<8x96xf32>
    %cst_48 = arith.constant dense<0.000000e+00> : vector<8x96xf32>
    %179 = tpu.matmul %174, %13, %cst_48 {dimension_numbers = #tpu.dot_dimension_numbers<[1], [0], [0], [1], [0, 0, 1, 1], [], []>} : vector<8x32xf32>, vector<32x96xf32>, vector<8x96xf32> -> vector<8x96xf32>
    %180 = arith.addf %179, %17 : vector<8x96xf32>
    %181 = vector.extract_strided_slice %178 {offsets = [0, 0], sizes = [8, 64], strides = [1, 1]} : vector<8x96xf32> to vector<8x64xf32>
    %182 = vector.extract_strided_slice %180 {offsets = [0, 0], sizes = [8, 64], strides = [1, 1]} : vector<8x96xf32> to vector<8x64xf32>
    %183 = arith.addf %181, %182 : vector<8x64xf32>
    %184 = arith.negf %183 : vector<8x64xf32>
    %185 = math.exp %184 : vector<8x64xf32>
    %cst_49 = arith.constant 1.000000e+00 : f32
    %186 = vector.broadcast %cst_49 : f32 to vector<8x64xf32>
    %187 = arith.addf %186, %185 : vector<8x64xf32>
    %188 = arith.divf %186, %187 : vector<8x64xf32>
    %189 = vector.extract_strided_slice %188 {offsets = [0, 0], sizes = [8, 32], strides = [1, 1]} : vector<8x64xf32> to vector<8x32xf32>
    %190 = vector.extract_strided_slice %188 {offsets = [0, 32], sizes = [8, 32], strides = [1, 1]} : vector<8x64xf32> to vector<8x32xf32>
    %191 = vector.extract_strided_slice %178 {offsets = [0, 64], sizes = [8, 32], strides = [1, 1]} : vector<8x96xf32> to vector<8x32xf32>
    %192 = vector.extract_strided_slice %180 {offsets = [0, 64], sizes = [8, 32], strides = [1, 1]} : vector<8x96xf32> to vector<8x32xf32>
    %193 = arith.mulf %189, %192 : vector<8x32xf32>
    %194 = arith.addf %191, %193 : vector<8x32xf32>
    %195 = math.tanh %194 : vector<8x32xf32>
    %cst_50 = arith.constant 1.000000e+00 : f32
    %196 = vector.broadcast %cst_50 : f32 to vector<8x32xf32>
    %197 = arith.subf %196, %190 : vector<8x32xf32>
    %198 = arith.mulf %197, %195 : vector<8x32xf32>
    %199 = arith.mulf %190, %174 : vector<8x32xf32>
    %200 = arith.addf %198, %199 : vector<8x32xf32>
    %cst_51 = arith.constant dense<0.000000e+00> : vector<8x128xf32>
    %201 = tpu.matmul %200, %14, %cst_51 {dimension_numbers = #tpu.dot_dimension_numbers<[1], [0], [0], [1], [0, 0, 1, 1], [], []>} : vector<8x32xf32>, vector<32x128xf32>, vector<8x128xf32> -> vector<8x128xf32>
    %202 = arith.addf %201, %20 : vector<8x128xf32>
    %c0_52 = arith.constant 0 : index
    %c768 = arith.constant 768 : index
    %203 = vector.load %arg9[%c0_52, %c768] : memref<8x1024xf32, #tpu.memory_space<vmem>>, vector<8x128xf32>
    tpu.vector_store %arg9[%c0_52, %c768], %202 {strides = array<i32>} : memref<8x1024xf32, #tpu.memory_space<vmem>>, vector<8x128xf32>,
    %204 = vector.extract_strided_slice %12 {offsets = [56, 0], sizes = [8, 96], strides = [1, 1]} : vector<64x96xf32> to vector<8x96xf32>
    %cst_53 = arith.constant dense<0.000000e+00> : vector<8x96xf32>
    %205 = tpu.matmul %200, %13, %cst_53 {dimension_numbers = #tpu.dot_dimension_numbers<[1], [0], [0], [1], [0, 0, 1, 1], [], []>} : vector<8x32xf32>, vector<32x96xf32>, vector<8x96xf32> -> vector<8x96xf32>
    %206 = arith.addf %205, %17 : vector<8x96xf32>
    %207 = vector.extract_strided_slice %204 {offsets = [0, 0], sizes = [8, 64], strides = [1, 1]} : vector<8x96xf32> to vector<8x64xf32>
    %208 = vector.extract_strided_slice %206 {offsets = [0, 0], sizes = [8, 64], strides = [1, 1]} : vector<8x96xf32> to vector<8x64xf32>
    %209 = arith.addf %207, %208 : vector<8x64xf32>
    %210 = arith.negf %209 : vector<8x64xf32>
    %211 = math.exp %210 : vector<8x64xf32>
    %cst_54 = arith.constant 1.000000e+00 : f32
    %212 = vector.broadcast %cst_54 : f32 to vector<8x64xf32>
    %213 = arith.addf %212, %211 : vector<8x64xf32>
    %214 = arith.divf %212, %213 : vector<8x64xf32>
    %215 = vector.extract_strided_slice %214 {offsets = [0, 0], sizes = [8, 32], strides = [1, 1]} : vector<8x64xf32> to vector<8x32xf32>
    %216 = vector.extract_strided_slice %214 {offsets = [0, 32], sizes = [8, 32], strides = [1, 1]} : vector<8x64xf32> to vector<8x32xf32>
    %217 = vector.extract_strided_slice %204 {offsets = [0, 64], sizes = [8, 32], strides = [1, 1]} : vector<8x96xf32> to vector<8x32xf32>
    %218 = vector.extract_strided_slice %206 {offsets = [0, 64], sizes = [8, 32], strides = [1, 1]} : vector<8x96xf32> to vector<8x32xf32>
    %219 = arith.mulf %215, %218 : vector<8x32xf32>
    %220 = arith.addf %217, %219 : vector<8x32xf32>
    %221 = math.tanh %220 : vector<8x32xf32>
    %cst_55 = arith.constant 1.000000e+00 : f32
    %222 = vector.broadcast %cst_55 : f32 to vector<8x32xf32>
    %223 = arith.subf %222, %216 : vector<8x32xf32>
    %224 = arith.mulf %223, %221 : vector<8x32xf32>
    %225 = arith.mulf %216, %200 : vector<8x32xf32>
    %226 = arith.addf %224, %225 : vector<8x32xf32>
    %cst_56 = arith.constant dense<0.000000e+00> : vector<8x128xf32>
    %227 = tpu.matmul %226, %14, %cst_56 {dimension_numbers = #tpu.dot_dimension_numbers<[1], [0], [0], [1], [0, 0, 1, 1], [], []>} : vector<8x32xf32>, vector<32x128xf32>, vector<8x128xf32> -> vector<8x128xf32>
    %228 = arith.addf %227, %20 : vector<8x128xf32>
    %c0_57 = arith.constant 0 : index
    %c896 = arith.constant 896 : index
    %229 = vector.load %arg9[%c0_57, %c896] : memref<8x1024xf32, #tpu.memory_space<vmem>>, vector<8x128xf32>
    tpu.vector_store %arg9[%c0_57, %c896], %228 {strides = array<i32>} : memref<8x1024xf32, #tpu.memory_space<vmem>>, vector<8x128xf32>,
    return
  }
  func.func @transform_0(%arg0: i32) -> (i32, i32) {
    %c0_i32 = arith.constant 0 : i32
    %c0_i32_0 = arith.constant 0 : i32
    return %arg0, %c0_i32 : i32, i32
  }
  func.func @transform_1(%arg0: i32) -> (i32, i32) {
    %c0_i32 = arith.constant 0 : i32
    %c0_i32_0 = arith.constant 0 : i32
    %c0_i32_1 = arith.constant 0 : i32
    return %c0_i32, %c0_i32_0 : i32, i32
  }
  func.func @transform_2(%arg0: i32) -> (i32, i32) {
    %c0_i32 = arith.constant 0 : i32
    %c0_i32_0 = arith.constant 0 : i32
    %c0_i32_1 = arith.constant 0 : i32
    return %c0_i32, %c0_i32_0 : i32, i32
  }
  func.func @transform_3(%arg0: i32) -> (i32, i32) {
    %c0_i32 = arith.constant 0 : i32
    %c0_i32_0 = arith.constant 0 : i32
    %c0_i32_1 = arith.constant 0 : i32
    return %c0_i32, %c0_i32_0 : i32, i32
  }
  func.func @transform_4(%arg0: i32) -> (i32, i32) {
    %c0_i32 = arith.constant 0 : i32
    %c0_i32_0 = arith.constant 0 : i32
    %c0_i32_1 = arith.constant 0 : i32
    return %c0_i32, %c0_i32_0 : i32, i32
  }
  func.func @transform_5(%arg0: i32) -> (i32, i32) {
    %c0_i32 = arith.constant 0 : i32
    %c0_i32_0 = arith.constant 0 : i32
    %c0_i32_1 = arith.constant 0 : i32
    return %c0_i32, %c0_i32_0 : i32, i32
  }
  func.func @transform_6(%arg0: i32) -> (i32, i32) {
    %c0_i32 = arith.constant 0 : i32
    %c0_i32_0 = arith.constant 0 : i32
    %c0_i32_1 = arith.constant 0 : i32
    return %c0_i32, %c0_i32_0 : i32, i32
  }
  func.func @transform_7(%arg0: i32) -> (i32, i32) {
    %c0_i32 = arith.constant 0 : i32
    %c0_i32_0 = arith.constant 0 : i32
    %c0_i32_1 = arith.constant 0 : i32
    return %c0_i32, %c0_i32_0 : i32, i32
  }
  func.func @transform_8(%arg0: i32) -> (i32, i32) {
    %c0_i32 = arith.constant 0 : i32
    %c0_i32_0 = arith.constant 0 : i32
    return %arg0, %c0_i32 : i32, i32
  }
}

</mosaic_0001>

<llo_original>
// kernel: tpu_custom_call.1
$region0: #{tpu_custom_call.1}
  #allocation0 [shape = 'u32[]', space=smem, size = 0x4, offset = 0x4, fixed_abs, tag = 'smem constant byte address 0x4 - core index']
  #allocation1 [shape = 'u32[144,128]{1,0:T(1,128)}', space=vmem, size = 0x12000, scoped, tag = 'internal scratch']
  %s0 = inlined_call_operand.vmem [shape: s32[64,1], index: 0, kind: input, shape index: {}]
  %s1 = inlined_call_operand.vmem [shape: f32[50,32], index: 1, kind: input, shape index: {}]
  %s2 = inlined_call_operand.vmem [shape: f32[32,96], index: 2, kind: input, shape index: {}]
  %s3 = inlined_call_operand.vmem [shape: f32[32,96], index: 3, kind: input, shape index: {}]
  %s4 = inlined_call_operand.vmem [shape: f32[1,96], index: 4, kind: input, shape index: {}]
  %s5 = inlined_call_operand.vmem [shape: f32[1,96], index: 5, kind: input, shape index: {}]
  %s6 = inlined_call_operand.vmem [shape: f32[32,128], index: 6, kind: input, shape index: {}]
  %s7 = inlined_call_operand.vmem [shape: f32[1,128], index: 7, kind: input, shape index: {}]
  %s8 = inlined_call_operand.hbm [shape: f32[8,1024], index: 8, kind: output, shape index: {}]
  %s9 = sld [smem:[#allocation0]]
  $region42: #{tpu_custom_call.1} parent=0
    _
  %s11 = ssub.s32 1, %s9
  %s12 = scalar_select 0, %s11, %s9
  $region1: #{tpu_custom_call.1} parent=0
    #allocation2 [shape = 'u8[32768]{0}', space=vmem, size = 0x8000, scoped, tag = 'output window, operand 0, single buffered']
    #allocation3 [shape = 's32[1]{0}', space=sflag, size = 0x4, scoped, tag = 'scoped memory for tpu_custom_call.1']
    %13 = vsyncpa [#allocation3], 0
    // Predicated region
    $region2: #{tpu_custom_call.1} parent=1 // pred_check
      _
    $region3: #{tpu_custom_call.1} parent=1 // pred_check_branch
      %15 = sbr.rel (0) target = $region5
    $region4: #{tpu_custom_call.1} parent=1 // pred_region
      _
    $region5: #{tpu_custom_call.1} parent=1 // pred_fallthru
      _
    // Predicated region
    $region6: #{tpu_custom_call.1} parent=1 // pred_check
      _
    $region7: #{tpu_custom_call.1} parent=1 // pred_check_branch
      %17 = sbr.rel (0) target = $region9
    $region8: #{tpu_custom_call.1} parent=1 // pred_region
      _
    $region9: #{tpu_custom_call.1} parent=1 // pred_fallthru
      _
    // Predicated region
    $region10: #{tpu_custom_call.1} parent=1 // pred_check
      _
    $region11: #{tpu_custom_call.1} parent=1 // pred_check_branch
      %19 = sbr.rel (0) target = $region13
    $region12: #{tpu_custom_call.1} parent=1 // pred_region
      _
    $region13: #{tpu_custom_call.1} parent=1 // pred_fallthru
      _
    // Predicated region
    $region14: #{tpu_custom_call.1} parent=1 // pred_check
      _
    $region15: #{tpu_custom_call.1} parent=1 // pred_check_branch
      %21 = sbr.rel (0) target = $region17
    $region16: #{tpu_custom_call.1} parent=1 // pred_region
      _
    $region17: #{tpu_custom_call.1} parent=1 // pred_fallthru
      _
    // Predicated region
    $region18: #{tpu_custom_call.1} parent=1 // pred_check
      _
    $region19: #{tpu_custom_call.1} parent=1 // pred_check_branch
      %23 = sbr.rel (0) target = $region21
    $region20: #{tpu_custom_call.1} parent=1 // pred_region
      _
    $region21: #{tpu_custom_call.1} parent=1 // pred_fallthru
      _
    // Predicated region
    $region22: #{tpu_custom_call.1} parent=1 // pred_check
      _
    $region23: #{tpu_custom_call.1} parent=1 // pred_check_branch
      %25 = sbr.rel (0) target = $region25
    $region24: #{tpu_custom_call.1} parent=1 // pred_region
      _
    $region25: #{tpu_custom_call.1} parent=1 // pred_fallthru
      _
    // Predicated region
    $region26: #{tpu_custom_call.1} parent=1 // pred_check
      _
    $region27: #{tpu_custom_call.1} parent=1 // pred_check_branch
      %27 = sbr.rel (0) target = $region29
    $region28: #{tpu_custom_call.1} parent=1 // pred_region
      _
    $region29: #{tpu_custom_call.1} parent=1 // pred_fallthru
      _
    // Predicated region
    $region30: #{tpu_custom_call.1} parent=1 // pred_check
      _
    $region31: #{tpu_custom_call.1} parent=1 // pred_check_branch
      %29 = sbr.rel (0) target = $region33
    $region32: #{tpu_custom_call.1} parent=1 // pred_region
      _
    $region33: #{tpu_custom_call.1} parent=1 // pred_fallthru
      _
    %v30 = vld [vmem:[%s0] sm:$0xff]
    %v31 = vld [vmem:[%s0 + $0x8] sm:$0xff]
    %v32 = vld [vmem:[%s0 + $0x10] sm:$0xff]
    %v33 = vld [vmem:[%s0 + $0x18] sm:$0xff]
    %v34 = vld [vmem:[%s0 + $0x20] sm:$0xff]
    %v35 = vld [vmem:[%s0 + $0x28] sm:$0xff]
    %v36 = vld [vmem:[%s0 + $0x30] sm:$0xff]
    %v37 = vld [vmem:[%s0 + $0x38] sm:$0xff]
    %v38 = vlaneseq
    %v39 = vand.u32 %v38, 127
    %40 = vset.pattern.permute.xlu0 0
    %41 = vperm.xlu0 %40, %v30
    %v42 = vpop.permute.xlu0 %41
    %43 = vset.pattern.permute.xlu0 0
    %44 = vperm.xlu0 %43, %v31
    %v45 = vpop.permute.xlu0 %44
    %46 = vset.pattern.permute.xlu0 0
    %47 = vperm.xlu0 %46, %v32
    %v48 = vpop.permute.xlu0 %47
    %49 = vset.pattern.permute.xlu0 0
    %50 = vperm.xlu0 %49, %v33
    %v51 = vpop.permute.xlu0 %50
    %52 = vset.pattern.permute.xlu0 0
    %53 = vperm.xlu0 %52, %v34
    %v54 = vpop.permute.xlu0 %53
    %55 = vset.pattern.permute.xlu0 0
    %56 = vperm.xlu0 %55, %v35
    %v57 = vpop.permute.xlu0 %56
    %58 = vset.pattern.permute.xlu0 0
    %59 = vperm.xlu0 %58, %v36
    %v60 = vpop.permute.xlu0 %59
    %61 = vset.pattern.permute.xlu0 0
    %62 = vperm.xlu0 %61, %v37
    %v63 = vpop.permute.xlu0 %62
    %vm64 = vcmp.eq.s32.totalorder %v39, %v42
    %vm65 = vcmp.eq.s32.totalorder %v39, %v45
    %vm66 = vcmp.eq.s32.totalorder %v39, %v48
    %vm67 = vcmp.eq.s32.totalorder %v39, %v51
    %vm68 = vcmp.eq.s32.totalorder %v39, %v54
    %vm69 = vcmp.eq.s32.totalorder %v39, %v57
    %vm70 = vcmp.eq.s32.totalorder %v39, %v60
    %vm71 = vcmp.eq.s32.totalorder %v39, %v63
    %v72 = vsel %vm64, 1, 0
    %v73 = vsel %vm65, 1, 0
    %v74 = vsel %vm66, 1, 0
    %v75 = vsel %vm67, 1, 0
    %v76 = vsel %vm68, 1, 0
    %v77 = vsel %vm69, 1, 0
    %v78 = vsel %vm70, 1, 0
    %v79 = vsel %vm71, 1, 0
    %v80 = vcvt.s32.f32 %v72
    %v81 = vcvt.s32.f32 %v73
    %v82 = vcvt.s32.f32 %v74
    %v83 = vcvt.s32.f32 %v75
    %v84 = vcvt.s32.f32 %v76
    %v85 = vcvt.s32.f32 %v77
    %v86 = vcvt.s32.f32 %v78
    %v87 = vcvt.s32.f32 %v79
    %v88 = vld [vmem:[%s1] sm:$0xff]
    %v89 = vld [vmem:[%s1 + $0x8] sm:$0xff]
    %v90 = vld [vmem:[%s1 + $0x10] sm:$0xff]
    %v91 = vld [vmem:[%s1 + $0x18] sm:$0xff]
    %v92 = vld [vmem:[%s1 + $0x20] sm:$0xff]
    %v93 = vld [vmem:[%s1 + $0x28] sm:$0xff]
    %v94 = vld [vmem:[%s1 + $0x30] sm:$0x3]
    %vm95 = vcmask 408576
    %v97 = vsel %vm95, %v80, 0
    %v100 = vsel %vm95, %v81, 0
    %v103 = vsel %vm95, %v82, 0
    %v106 = vsel %vm95, %v83, 0
    %v109 = vsel %vm95, %v84, 0
    %v112 = vsel %vm95, %v85, 0
    %v115 = vsel %vm95, %v86, 0
    %v118 = vsel %vm95, %v87, 0
    %vm120 = vcmask 1041408
    %v122 = vsel %vm120, %v94, 0
    %124 = vmatprep.subr.mxu0 0.0
    %125 = vmatpush1.msra.mxu0 0.0
    %126 = vmatprep.subr.mxu0 0.0
    %127 = vmatpush1.msra.mxu0 0.0
    %128 = vmatprep.subr.mxu0 0.0
    %129 = vmatpush1.msra.mxu0 0.0
    %130 = vmatprep.subr.mxu0 0.0
    %131 = vmatpush1.msra.mxu0 0.0
    %132 = vmatprep.subr.mxu0 0.0
    %133 = vmatpush1.msra.mxu0 0.0
    %134 = vmatprep.subr.mxu0 0.0
    %135 = vmatpush1.msra.mxu0 0.0
    %136 = vmatprep.subr.mxu0 0.0
    %137 = vmatpush1.msra.mxu0 0.0
    %138 = vmatprep.subr.mxu0 0.0
    %139 = vmatpush1.msra.mxu0 0.0
    %140 = vmatprep.subr.mxu0 0.0
    %141 = vmatpush1.msra.mxu0 0.0
    %142 = vmatprep.subr.mxu0 0.0
    %143 = vmatpush1.msra.mxu0 %v122
    %144 = vmatprep.subr.mxu0 0.0
    %145 = vmatpush1.msra.mxu0 %v93
    %146 = vmatprep.subr.mxu0 0.0
    %147 = vmatpush1.msra.mxu0 %v92
    %148 = vmatprep.subr.mxu0 0.0
    %149 = vmatpush1.msra.mxu0 %v91
    %150 = vmatprep.subr.mxu0 0.0
    %151 = vmatpush1.msra.mxu0 %v90
    %152 = vmatprep.subr.mxu0 0.0
    %153 = vmatpush1.msra.mxu0 %v89
    %154 = vmatprep.subr.mxu0 0.0
    %155 = vmatpush1.msra.mxu0 %v88
    %156 = vmatprep.subr.mxu0 0.0
    %157 = vmatpush2.msra.mxu0 0.0
    %158 = vmatprep.subr.mxu0 0.0
    %159 = vmatpush2.msra.mxu0 0.0
    %160 = vmatprep.subr.mxu0 0.0
    %161 = vmatpush2.msra.mxu0 0.0
    %162 = vmatprep.subr.mxu0 0.0
    %163 = vmatpush2.msra.mxu0 0.0
    %164 = vmatprep.subr.mxu0 0.0
    %165 = vmatpush2.msra.mxu0 0.0
    %166 = vmatprep.subr.mxu0 0.0
    %167 = vmatpush2.msra.mxu0 0.0
    %168 = vmatprep.subr.mxu0 0.0
    %169 = vmatpush2.msra.mxu0 0.0
    %170 = vmatprep.subr.mxu0 0.0
    %171 = vmatpush2.msra.mxu0 0.0
    %172 = vmatprep.subr.mxu0 0.0
    %173 = vmatpush2.msra.mxu0 0.0
    %174 = vmatprep.subr.mxu0 0.0
    %175 = vmatpush2.msra.mxu0 0.0
    %176 = vmatprep.subr.mxu0 0.0
    %177 = vmatpush2.msra.mxu0 0.0
    %178 = vmatprep.subr.mxu0 0.0
    %179 = vmatpush2.msra.mxu0 0.0
    %180 = vmatprep.subr.mxu0 0.0
    %181 = vmatpush2.msra.mxu0 0.0
    %182 = vmatprep.subr.mxu0 0.0
    %183 = vmatpush2.msra.mxu0 0.0
    %184 = vmatprep.subr.mxu0 0.0
    %185 = vmatpush2.msra.mxu0 0.0
    %186 = vmatprep.subr.mxu0 0.0
    %187 = vmatpush2.msra.mxu0 0.0
    %188 = vmatprep.mubr.f32.mxu0 0.0
    %189 = vmatmul.mubr.f32.gmra.mxu0 %v97
    %v190 = vpop.f32.mrf.mxu0
    %v191 = vadd.f32 0.0, %v190
    %v192 = vpop.f32.mrf.mxu0
    %193 = vmatprep.mubr.f32.mxu0 0.0
    %194 = vmatmul.mubr.f32.gmra.mxu0 %v100
    %v195 = vpop.f32.mrf.mxu0
    %v196 = vadd.f32 0.0, %v195
    %v197 = vpop.f32.mrf.mxu0
    %198 = vmatprep.mubr.f32.mxu0 0.0
    %199 = vmatmul.mubr.f32.gmra.mxu0 %v103
    %v200 = vpop.f32.mrf.mxu0
    %v201 = vadd.f32 0.0, %v200
    %v202 = vpop.f32.mrf.mxu0
    %203 = vmatprep.mubr.f32.mxu0 0.0
    %204 = vmatmul.mubr.f32.gmra.mxu0 %v106
    %v205 = vpop.f32.mrf.mxu0
    %v206 = vadd.f32 0.0, %v205
    %v207 = vpop.f32.mrf.mxu0
    %208 = vmatprep.mubr.f32.mxu0 0.0
    %209 = vmatmul.mubr.f32.gmra.mxu0 %v109
    %v210 = vpop.f32.mrf.mxu0
    %v211 = vadd.f32 0.0, %v210
    %v212 = vpop.f32.mrf.mxu0
    %213 = vmatprep.mubr.f32.mxu0 0.0
    %214 = vmatmul.mubr.f32.gmra.mxu0 %v112
    %v215 = vpop.f32.mrf.mxu0
    %v216 = vadd.f32 0.0, %v215
    %v217 = vpop.f32.mrf.mxu0
    %218 = vmatprep.mubr.f32.mxu0 0.0
    %219 = vmatmul.mubr.f32.gmra.mxu0 %v115
    %v220 = vpop.f32.mrf.mxu0
    %v221 = vadd.f32 0.0, %v220
    %v222 = vpop.f32.mrf.mxu0
    %223 = vmatprep.mubr.f32.mxu0 0.0
    %224 = vmatmul.mubr.f32.gmra.mxu0 %v118
    %v225 = vpop.f32.mrf.mxu0
    %v226 = vadd.f32 0.0, %v225
    %v227 = vpop.f32.mrf.mxu0
    %228 = vdwg.mxu0
    %v229 = vld [vmem:[%s2] sm:$0xff]
    %v230 = vld [vmem:[%s2 + $0x8] sm:$0xff]
    %v231 = vld [vmem:[%s2 + $0x10] sm:$0xff]
    %v232 = vld [vmem:[%s2 + $0x18] sm:$0xff]
    %v233 = vld [vmem:[%s4] sm:$0x1]
    %v235 = vlaneseq
    %v236 = vshrl.u32 %v235, 7
    %v237 = vsub.s32 0, %v236
    %v238 = vrot.slane %v233, %v237
    %vm240 = vcmask 261120
    %v242 = vsel %vm240, %v191, 0
    %v245 = vsel %vm240, %v196, 0
    %v248 = vsel %vm240, %v201, 0
    %v251 = vsel %vm240, %v206, 0
    %v254 = vsel %vm240, %v211, 0
    %v257 = vsel %vm240, %v216, 0
    %v260 = vsel %vm240, %v221, 0
    %v263 = vsel %vm240, %v226, 0
    %265 = vmatprep.subr.mxu0 0.0
    %266 = vmatpush1.msra.mxu0 0.0
    %267 = vmatprep.subr.mxu0 0.0
    %268 = vmatpush1.msra.mxu0 0.0
    %269 = vmatprep.subr.mxu0 0.0
    %270 = vmatpush1.msra.mxu0 0.0
    %271 = vmatprep.subr.mxu0 0.0
    %272 = vmatpush1.msra.mxu0 0.0
    %273 = vmatprep.subr.mxu0 0.0
    %274 = vmatpush1.msra.mxu0 0.0
    %275 = vmatprep.subr.mxu0 0.0
    %276 = vmatpush1.msra.mxu0 0.0
    %277 = vmatprep.subr.mxu0 0.0
    %278 = vmatpush1.msra.mxu0 0.0
    %279 = vmatprep.subr.mxu0 0.0
    %280 = vmatpush1.msra.mxu0 0.0
    %281 = vmatprep.subr.mxu0 0.0
    %282 = vmatpush1.msra.mxu0 0.0
    %283 = vmatprep.subr.mxu0 0.0
    %284 = vmatpush1.msra.mxu0 0.0
    %285 = vmatprep.subr.mxu0 0.0
    %286 = vmatpush1.msra.mxu0 0.0
    %287 = vmatprep.subr.mxu0 0.0
    %288 = vmatpush1.msra.mxu0 0.0
    %289 = vmatprep.subr.mxu0 0.0
    %290 = vmatpush1.msra.mxu0 %v232
    %291 = vmatprep.subr.mxu0 0.0
    %292 = vmatpush1.msra.mxu0 %v231
    %293 = vmatprep.subr.mxu0 0.0
    %294 = vmatpush1.msra.mxu0 %v230
    %295 = vmatprep.subr.mxu0 0.0
    %296 = vmatpush1.msra.mxu0 %v229
    %297 = vmatprep.subr.mxu0 0.0
    %298 = vmatpush2.msra.mxu0 0.0
    %299 = vmatprep.subr.mxu0 0.0
    %300 = vmatpush2.msra.mxu0 0.0
    %301 = vmatprep.subr.mxu0 0.0
    %302 = vmatpush2.msra.mxu0 0.0
    %303 = vmatprep.subr.mxu0 0.0
    %304 = vmatpush2.msra.mxu0 0.0
    %305 = vmatprep.subr.mxu0 0.0
    %306 = vmatpush2.msra.mxu0 0.0
    %307 = vmatprep.subr.mxu0 0.0
    %308 = vmatpush2.msra.mxu0 0.0
    %309 = vmatprep.subr.mxu0 0.0
    %310 = vmatpush2.msra.mxu0 0.0
    %311 = vmatprep.subr.mxu0 0.0
    %312 = vmatpush2.msra.mxu0 0.0
    %313 = vmatprep.subr.mxu0 0.0
    %314 = vmatpush2.msra.mxu0 0.0
    %315 = vmatprep.subr.mxu0 0.0
    %316 = vmatpush2.msra.mxu0 0.0
    %317 = vmatprep.subr.mxu0 0.0
    %318 = vmatpush2.msra.mxu0 0.0
    %319 = vmatprep.subr.mxu0 0.0
    %320 = vmatpush2.msra.mxu0 0.0
    %321 = vmatprep.subr.mxu0 0.0
    %322 = vmatpush2.msra.mxu0 0.0
    %323 = vmatprep.subr.mxu0 0.0
    %324 = vmatpush2.msra.mxu0 0.0
    %325 = vmatprep.subr.mxu0 0.0
    %326 = vmatpush2.msra.mxu0 0.0
    %327 = vmatprep.subr.mxu0 0.0
    %328 = vmatpush2.msra.mxu0 0.0
    %329 = vmatprep.mubr.f32.mxu0 0.0
    %330 = vmatmul.mubr.f32.gmra.mxu0 %v242
    %v331 = vpop.f32.mrf.mxu0
    %v332 = vadd.f32 %v238, %v331
    %v333 = vpop.f32.mrf.mxu0
    %334 = vmatprep.mubr.f32.mxu0 0.0
    %335 = vmatmul.mubr.f32.gmra.mxu0 %v245
    %v336 = vpop.f32.mrf.mxu0
    %v337 = vadd.f32 %v238, %v336
    %v338 = vpop.f32.mrf.mxu0
    %339 = vmatprep.mubr.f32.mxu0 0.0
    %340 = vmatmul.mubr.f32.gmra.mxu0 %v248
    %v341 = vpop.f32.mrf.mxu0
    %v342 = vadd.f32 %v238, %v341
    %v343 = vpop.f32.mrf.mxu0
    %344 = vmatprep.mubr.f32.mxu0 0.0
    %345 = vmatmul.mubr.f32.gmra.mxu0 %v251
    %v346 = vpop.f32.mrf.mxu0
    %v347 = vadd.f32 %v238, %v346
    %v348 = vpop.f32.mrf.mxu0
    %349 = vmatprep.mubr.f32.mxu0 0.0
    %350 = vmatmul.mubr.f32.gmra.mxu0 %v254
    %v351 = vpop.f32.mrf.mxu0
    %v352 = vadd.f32 %v238, %v351
    %v353 = vpop.f32.mrf.mxu0
    %354 = vmatprep.mubr.f32.mxu0 0.0
    %355 = vmatmul.mubr.f32.gmra.mxu0 %v257
    %v356 = vpop.f32.mrf.mxu0
    %v357 = vadd.f32 %v238, %v356
    %v358 = vpop.f32.mrf.mxu0
    %359 = vmatprep.mubr.f32.mxu0 0.0
    %360 = vmatmul.mubr.f32.gmra.mxu0 %v260
    %v361 = vpop.f32.mrf.mxu0
    %v362 = vadd.f32 %v238, %v361
    %v363 = vpop.f32.mrf.mxu0
    %364 = vmatprep.mubr.f32.mxu0 0.0
    %365 = vmatmul.mubr.f32.gmra.mxu0 %v263
    %v366 = vpop.f32.mrf.mxu0
    %v367 = vadd.f32 %v238, %v366
    %v368 = vpop.f32.mrf.mxu0
    %369 = vdwg.mxu0
    %v370 = vld [vmem:[%s3] sm:$0xff]
    %v371 = vld [vmem:[%s3 + $0x8] sm:$0xff]
    %v372 = vld [vmem:[%s3 + $0x10] sm:$0xff]
    %v373 = vld [vmem:[%s3 + $0x18] sm:$0xff]
    %v374 = vld [vmem:[%s6] sm:$0xff]
    %v375 = vld [vmem:[%s6 + $0x8] sm:$0xff]
    %v376 = vld [vmem:[%s6 + $0x10] sm:$0xff]
    %v377 = vld [vmem:[%s6 + $0x18] sm:$0xff]
    %v378 = vld [vmem:[%s5] sm:$0x1]
    %v380 = vlaneseq
    %v381 = vshrl.u32 %v380, 7
    %v382 = vsub.s32 0, %v381
    %v383 = vrot.slane %v378, %v382
    %v385 = vld [vmem:[%s7] sm:$0x1]
    %v387 = vlaneseq
    %v388 = vshrl.u32 %v387, 7
    %v389 = vsub.s32 0, %v388
    %v390 = vrot.slane %v385, %v389
    %v393 = vsel %vm240, 0.0, 0
    %395 = vmatprep.subr.mxu0 0.0
    %396 = vmatpush1.msra.mxu0 0.0
    %397 = vmatprep.subr.mxu0 0.0
    %398 = vmatpush1.msra.mxu0 0.0
    %399 = vmatprep.subr.mxu0 0.0
    %400 = vmatpush1.msra.mxu0 0.0
    %401 = vmatprep.subr.mxu0 0.0
    %402 = vmatpush1.msra.mxu0 0.0
    %403 = vmatprep.subr.mxu0 0.0
    %404 = vmatpush1.msra.mxu0 0.0
    %405 = vmatprep.subr.mxu0 0.0
    %406 = vmatpush1.msra.mxu0 0.0
    %407 = vmatprep.subr.mxu0 0.0
    %408 = vmatpush1.msra.mxu0 0.0
    %409 = vmatprep.subr.mxu0 0.0
    %410 = vmatpush1.msra.mxu0 0.0
    %411 = vmatprep.subr.mxu0 0.0
    %412 = vmatpush1.msra.mxu0 0.0
    %413 = vmatprep.subr.mxu0 0.0
    %414 = vmatpush1.msra.mxu0 0.0
    %415 = vmatprep.subr.mxu0 0.0
    %416 = vmatpush1.msra.mxu0 0.0
    %417 = vmatprep.subr.mxu0 0.0
    %418 = vmatpush1.msra.mxu0 0.0
    %419 = vmatprep.subr.mxu0 0.0
    %420 = vmatpush1.msra.mxu0 %v373
    %421 = vmatprep.subr.mxu0 0.0
    %422 = vmatpush1.msra.mxu0 %v372
    %423 = vmatprep.subr.mxu0 0.0
    %424 = vmatpush1.msra.mxu0 %v371
    %425 = vmatprep.subr.mxu0 0.0
    %426 = vmatpush1.msra.mxu0 %v370
    %427 = vmatprep.subr.mxu0 0.0
    %428 = vmatpush2.msra.mxu0 0.0
    %429 = vmatprep.subr.mxu0 0.0
    %430 = vmatpush2.msra.mxu0 0.0
    %431 = vmatprep.subr.mxu0 0.0
    %432 = vmatpush2.msra.mxu0 0.0
    %433 = vmatprep.subr.mxu0 0.0
    %434 = vmatpush2.msra.mxu0 0.0
    %435 = vmatprep.subr.mxu0 0.0
    %436 = vmatpush2.msra.mxu0 0.0
    %437 = vmatprep.subr.mxu0 0.0
    %438 = vmatpush2.msra.mxu0 0.0
    %439 = vmatprep.subr.mxu0 0.0
    %440 = vmatpush2.msra.mxu0 0.0
    %441 = vmatprep.subr.mxu0 0.0
    %442 = vmatpush2.msra.mxu0 0.0
    %443 = vmatprep.subr.mxu0 0.0
    %444 = vmatpush2.msra.mxu0 0.0
    %445 = vmatprep.subr.mxu0 0.0
    %446 = vmatpush2.msra.mxu0 0.0
    %447 = vmatprep.subr.mxu0 0.0
    %448 = vmatpush2.msra.mxu0 0.0
    %449 = vmatprep.subr.mxu0 0.0
    %450 = vmatpush2.msra.mxu0 0.0
    %451 = vmatprep.subr.mxu0 0.0
    %452 = vmatpush2.msra.mxu0 0.0
    %453 = vmatprep.subr.mxu0 0.0
    %454 = vmatpush2.msra.mxu0 0.0
    %455 = vmatprep.subr.mxu0 0.0
    %456 = vmatpush2.msra.mxu0 0.0
    %457 = vmatprep.subr.mxu0 0.0
    %458 = vmatpush2.msra.mxu0 0.0
    %459 = vmatprep.mubr.f32.mxu0 0.0
    %460 = vmatmul.mubr.f32.gmra.mxu0 %v393
    %v461 = vpop.f32.mrf.mxu0
    %v462 = vadd.f32 %v383, %v461
    %v463 = vpop.f32.mrf.mxu0
    %464 = vdwg.mxu0
    %v465 = vadd.f32 %v332, %v462
    %v466 = vxor.u32 %v465, 2147483648
    %v467 = vmul.f32 %v466, 1.442695
    %v468 = vpow.pop %v467
    %v469 = vadd.f32 %v468, 1.0
    %v470 = vrcp.pop %v469
    %v471 = vmul.f32 1.0, %v470
    %473 = vrot.lane.b32.xlu0 %v462, 64
    %v474 = vpop.permute.xlu0 %473
    %v476 = vmul.f32 %v471, %v474
    %478 = vrot.lane.b32.xlu0 %v476, 64
    %v479 = vpop.permute.xlu0 %478
    %v481 = vadd.f32 %v332, %v479
    %v482 = vtanh.pop %v481
    %v483 = vsub.f32 1.0, %v471
    %485 = vrot.lane.b32.xlu0 %v482, 96
    %v486 = vpop.permute.xlu0 %485
    %v488 = vmul.f32 %v483, %v486
    %v489 = vmul.f32 %v471, 0.0
    %v490 = vadd.f32 %v488, %v489
    %492 = vrot.lane.b32.xlu0 %v490, 96
    %v493 = vpop.permute.xlu0 %492
    %v494 = vsel %vm240, %v493, 0
    %496 = vmatprep.subr.mxu0 0.0
    %497 = vmatpush1.msra.mxu0 0.0
    %498 = vmatprep.subr.mxu0 0.0
    %499 = vmatpush1.msra.mxu0 0.0
    %500 = vmatprep.subr.mxu0 0.0
    %501 = vmatpush1.msra.mxu0 0.0
    %502 = vmatprep.subr.mxu0 0.0
    %503 = vmatpush1.msra.mxu0 0.0
    %504 = vmatprep.subr.mxu0 0.0
    %505 = vmatpush1.msra.mxu0 0.0
    %506 = vmatprep.subr.mxu0 0.0
    %507 = vmatpush1.msra.mxu0 0.0
    %508 = vmatprep.subr.mxu0 0.0
    %509 = vmatpush1.msra.mxu0 0.0
    %510 = vmatprep.subr.mxu0 0.0
    %511 = vmatpush1.msra.mxu0 0.0
    %512 = vmatprep.subr.mxu0 0.0
    %513 = vmatpush1.msra.mxu0 0.0
    %514 = vmatprep.subr.mxu0 0.0
    %515 = vmatpush1.msra.mxu0 0.0
    %516 = vmatprep.subr.mxu0 0.0
    %517 = vmatpush1.msra.mxu0 0.0
    %518 = vmatprep.subr.mxu0 0.0
    %519 = vmatpush1.msra.mxu0 0.0
    %520 = vmatprep.subr.mxu0 0.0
    %521 = vmatpush1.msra.mxu0 %v377
    %522 = vmatprep.subr.mxu0 0.0
    %523 = vmatpush1.msra.mxu0 %v376
    %524 = vmatprep.subr.mxu0 0.0
    %525 = vmatpush1.msra.mxu0 %v375
    %526 = vmatprep.subr.mxu0 0.0
    %527 = vmatpush1.msra.mxu0 %v374
    %528 = vmatprep.subr.mxu0 0.0
    %529 = vmatpush2.msra.mxu0 0.0
    %530 = vmatprep.subr.mxu0 0.0
    %531 = vmatpush2.msra.mxu0 0.0
    %532 = vmatprep.subr.mxu0 0.0
    %533 = vmatpush2.msra.mxu0 0.0
    %534 = vmatprep.subr.mxu0 0.0
    %535 = vmatpush2.msra.mxu0 0.0
    %536 = vmatprep.subr.mxu0 0.0
    %537 = vmatpush2.msra.mxu0 0.0
    %538 = vmatprep.subr.mxu0 0.0
    %539 = vmatpush2.msra.mxu0 0.0
    %540 = vmatprep.subr.mxu0 0.0
    %541 = vmatpush2.msra.mxu0 0.0
    %542 = vmatprep.subr.mxu0 0.0
    %543 = vmatpush2.msra.mxu0 0.0
    %544 = vmatprep.subr.mxu0 0.0
    %545 = vmatpush2.msra.mxu0 0.0
    %546 = vmatprep.subr.mxu0 0.0
    %547 = vmatpush2.msra.mxu0 0.0
    %548 = vmatprep.subr.mxu0 0.0
    %549 = vmatpush2.msra.mxu0 0.0
    %550 = vmatprep.subr.mxu0 0.0
    %551 = vmatpush2.msra.mxu0 0.0
    %552 = vmatprep.subr.mxu0 0.0
    %553 = vmatpush2.msra.mxu0 0.0
    %554 = vmatprep.subr.mxu0 0.0
    %555 = vmatpush2.msra.mxu0 0.0
    %556 = vmatprep.subr.mxu0 0.0
    %557 = vmatpush2.msra.mxu0 0.0
    %558 = vmatprep.subr.mxu0 0.0
    %559 = vmatpush2.msra.mxu0 0.0
    %560 = vmatprep.mubr.f32.mxu0 0.0
    %561 = vmatmul.mubr.f32.gmra.mxu0 %v494
    %v562 = vpop.f32.mrf.mxu0
    %v563 = vadd.f32 %v390, %v562
    %v564 = vpop.f32.mrf.mxu0
    %565 = vdwg.mxu0
    %566 = vst [vmem:[#allocation2] sm:$0xff] %v563
    %567 = vmatprep.subr.mxu0 0.0
    %568 = vmatpush1.msra.mxu0 0.0
    %569 = vmatprep.subr.mxu0 0.0
    %570 = vmatpush1.msra.mxu0 0.0
    %571 = vmatprep.subr.mxu0 0.0
    %572 = vmatpush1.msra.mxu0 0.0
    %573 = vmatprep.subr.mxu0 0.0
    %574 = vmatpush1.msra.mxu0 0.0
    %575 = vmatprep.subr.mxu0 0.0
    %576 = vmatpush1.msra.mxu0 0.0
    %577 = vmatprep.subr.mxu0 0.0
    %578 = vmatpush1.msra.mxu0 0.0
    %579 = vmatprep.subr.mxu0 0.0
    %580 = vmatpush1.msra.mxu0 0.0
    %581 = vmatprep.subr.mxu0 0.0
    %582 = vmatpush1.msra.mxu0 0.0
    %583 = vmatprep.subr.mxu0 0.0
    %584 = vmatpush1.msra.mxu0 0.0
    %585 = vmatprep.subr.mxu0 0.0
    %586 = vmatpush1.msra.mxu0 0.0
    %587 = vmatprep.subr.mxu0 0.0
    %588 = vmatpush1.msra.mxu0 0.0
    %589 = vmatprep.subr.mxu0 0.0
    %590 = vmatpush1.msra.mxu0 0.0
    %591 = vmatprep.subr.mxu0 0.0
    %592 = vmatpush1.msra.mxu0 %v373
    %593 = vmatprep.subr.mxu0 0.0
    %594 = vmatpush1.msra.mxu0 %v372
    %595 = vmatprep.subr.mxu0 0.0
    %596 = vmatpush1.msra.mxu0 %v371
    %597 = vmatprep.subr.mxu0 0.0
    %598 = vmatpush1.msra.mxu0 %v370
    %599 = vmatprep.subr.mxu0 0.0
    %600 = vmatpush2.msra.mxu0 0.0
    %601 = vmatprep.subr.mxu0 0.0
    %602 = vmatpush2.msra.mxu0 0.0
    %603 = vmatprep.subr.mxu0 0.0
    %604 = vmatpush2.msra.mxu0 0.0
    %605 = vmatprep.subr.mxu0 0.0
    %606 = vmatpush2.msra.mxu0 0.0
    %607 = vmatprep.subr.mxu0 0.0
    %608 = vmatpush2.msra.mxu0 0.0
    %609 = vmatprep.subr.mxu0 0.0
    %610 = vmatpush2.msra.mxu0 0.0
    %611 = vmatprep.subr.mxu0 0.0
    %612 = vmatpush2.msra.mxu0 0.0
    %613 = vmatprep.subr.mxu0 0.0
    %614 = vmatpush2.msra.mxu0 0.0
    %615 = vmatprep.subr.mxu0 0.0
    %616 = vmatpush2.msra.mxu0 0.0
    %617 = vmatprep.subr.mxu0 0.0
    %618 = vmatpush2.msra.mxu0 0.0
    %619 = vmatprep.subr.mxu0 0.0
    %620 = vmatpush2.msra.mxu0 0.0
    %621 = vmatprep.subr.mxu0 0.0
    %622 = vmatpush2.msra.mxu0 0.0
    %623 = vmatprep.subr.mxu0 0.0
    %624 = vmatpush2.msra.mxu0 0.0
    %625 = vmatprep.subr.mxu0 0.0
    %626 = vmatpush2.msra.mxu0 0.0
    %627 = vmatprep.subr.mxu0 0.0
    %628 = vmatpush2.msra.mxu0 0.0
    %629 = vmatprep.subr.mxu0 0.0
    %630 = vmatpush2.msra.mxu0 0.0
    %631 = vmatprep.mubr.f32.mxu0 0.0
    %632 = vmatmul.mubr.f32.gmra.mxu0 %v494
    %v633 = vpop.f32.mrf.mxu0
    %v634 = vadd.f32 %v383, %v633
    %v635 = vpop.f32.mrf.mxu0
    %636 = vdwg.mxu0
    %v637 = vadd.f32 %v337, %v634
    %v638 = vxor.u32 %v637, 2147483648
    %v639 = vmul.f32 %v638, 1.442695
    %v640 = vpow.pop %v639
    %v641 = vadd.f32 %v640, 1.0
    %v642 = vrcp.pop %v641
    %v643 = vmul.f32 1.0, %v642
    %645 = vrot.lane.b32.xlu0 %v634, 64
    %v646 = vpop.permute.xlu0 %645
    %v648 = vmul.f32 %v643, %v646
    %650 = vrot.lane.b32.xlu0 %v648, 64
    %v651 = vpop.permute.xlu0 %650
    %v653 = vadd.f32 %v337, %v651
    %v654 = vtanh.pop %v653
    %v655 = vsub.f32 1.0, %v643
    %657 = vrot.lane.b32.xlu0 %v654, 96
    %v658 = vpop.permute.xlu0 %657
    %v660 = vmul.f32 %v655, %v658
    %v661 = vmul.f32 %v643, %v490
    %v662 = vadd.f32 %v660, %v661
    %664 = vrot.lane.b32.xlu0 %v662, 96
    %v665 = vpop.permute.xlu0 %664
    %v666 = vsel %vm240, %v665, 0
    %668 = vmatprep.subr.mxu0 0.0
    %669 = vmatpush1.msra.mxu0 0.0
    %670 = vmatprep.subr.mxu0 0.0
    %671 = vmatpush1.msra.mxu0 0.0
    %672 = vmatprep.subr.mxu0 0.0
    %673 = vmatpush1.msra.mxu0 0.0
    %674 = vmatprep.subr.mxu0 0.0
    %675 = vmatpush1.msra.mxu0 0.0
    %676 = vmatprep.subr.mxu0 0.0
    %677 = vmatpush1.msra.mxu0 0.0
    %678 = vmatprep.subr.mxu0 0.0
    %679 = vmatpush1.msra.mxu0 0.0
    %680 = vmatprep.subr.mxu0 0.0
    %681 = vmatpush1.msra.mxu0 0.0
    %682 = vmatprep.subr.mxu0 0.0
    %683 = vmatpush1.msra.mxu0 0.0
    %684 = vmatprep.subr.mxu0 0.0
    %685 = vmatpush1.msra.mxu0 0.0
    %686 = vmatprep.subr.mxu0 0.0
    %687 = vmatpush1.msra.mxu0 0.0
    %688 = vmatprep.subr.mxu0 0.0
    %689 = vmatpush1.msra.mxu0 0.0
    %690 = vmatprep.subr.mxu0 0.0
    %691 = vmatpush1.msra.mxu0 0.0
    %692 = vmatprep.subr.mxu0 0.0
    %693 = vmatpush1.msra.mxu0 %v377
    %694 = vmatprep.subr.mxu0 0.0
    %695 = vmatpush1.msra.mxu0 %v376
    %696 = vmatprep.subr.mxu0 0.0
    %697 = vmatpush1.msra.mxu0 %v375
    %698 = vmatprep.subr.mxu0 0.0
    %699 = vmatpush1.msra.mxu0 %v374
    %700 = vmatprep.subr.mxu0 0.0
    %701 = vmatpush2.msra.mxu0 0.0
    %702 = vmatprep.subr.mxu0 0.0
    %703 = vmatpush2.msra.mxu0 0.0
    %704 = vmatprep.subr.mxu0 0.0
    %705 = vmatpush2.msra.mxu0 0.0
    %706 = vmatprep.subr.mxu0 0.0
    %707 = vmatpush2.msra.mxu0 0.0
    %708 = vmatprep.subr.mxu0 0.0
    %709 = vmatpush2.msra.mxu0 0.0
    %710 = vmatprep.subr.mxu0 0.0
    %711 = vmatpush2.msra.mxu0 0.0
    %712 = vmatprep.subr.mxu0 0.0
    %713 = vmatpush2.msra.mxu0 0.0
    %714 = vmatprep.subr.mxu0 0.0
    %715 = vmatpush2.msra.mxu0 0.0
    %716 = vmatprep.subr.mxu0 0.0
    %717 = vmatpush2.msra.mxu0 0.0
    %718 = vmatprep.subr.mxu0 0.0
    %719 = vmatpush2.msra.mxu0 0.0
    %720 = vmatprep.subr.mxu0 0.0
    %721 = vmatpush2.msra.mxu0 0.0
    %722 = vmatprep.subr.mxu0 0.0
    %723 = vmatpush2.msra.mxu0 0.0
    %724 = vmatprep.subr.mxu0 0.0
    %725 = vmatpush2.msra.mxu0 0.0
    %726 = vmatprep.subr.mxu0 0.0
    %727 = vmatpush2.msra.mxu0 0.0
    %728 = vmatprep.subr.mxu0 0.0
    %729 = vmatpush2.msra.mxu0 0.0
    %730 = vmatprep.subr.mxu0 0.0
    %731 = vmatpush2.msra.mxu0 0.0
    %732 = vmatprep.mubr.f32.mxu0 0.0
    %733 = vmatmul.mubr.f32.gmra.mxu0 %v666
    %v734 = vpop.f32.mrf.mxu0
    %v735 = vadd.f32 %v390, %v734
    %v736 = vpop.f32.mrf.mxu0
    %737 = vdwg.mxu0
    %738 = vst [vmem:[#allocation2 + $0x8] sm:$0xff] %v735
    %739 = vmatprep.subr.mxu0 0.0
    %740 = vmatpush1.msra.mxu0 0.0
    %741 = vmatprep.subr.mxu0 0.0
    %742 = vmatpush1.msra.mxu0 0.0
    %743 = vmatprep.subr.mxu0 0.0
    %744 = vmatpush1.msra.mxu0 0.0
    %745 = vmatprep.subr.mxu0 0.0
    %746 = vmatpush1.msra.mxu0 0.0
    %747 = vmatprep.subr.mxu0 0.0
    %748 = vmatpush1.msra.mxu0 0.0
    %749 = vmatprep.subr.mxu0 0.0
    %750 = vmatpush1.msra.mxu0 0.0
    %751 = vmatprep.subr.mxu0 0.0
    %752 = vmatpush1.msra.mxu0 0.0
    %753 = vmatprep.subr.mxu0 0.0
    %754 = vmatpush1.msra.mxu0 0.0
    %755 = vmatprep.subr.mxu0 0.0
    %756 = vmatpush1.msra.mxu0 0.0
    %757 = vmatprep.subr.mxu0 0.0
    %758 = vmatpush1.msra.mxu0 0.0
    %759 = vmatprep.subr.mxu0 0.0
    %760 = vmatpush1.msra.mxu0 0.0
    %761 = vmatprep.subr.mxu0 0.0
    %762 = vmatpush1.msra.mxu0 0.0
    %763 = vmatprep.subr.mxu0 0.0
    %764 = vmatpush1.msra.mxu0 %v373
    %765 = vmatprep.subr.mxu0 0.0
    %766 = vmatpush1.msra.mxu0 %v372
    %767 = vmatprep.subr.mxu0 0.0
    %768 = vmatpush1.msra.mxu0 %v371
    %769 = vmatprep.subr.mxu0 0.0
    %770 = vmatpush1.msra.mxu0 %v370
    %771 = vmatprep.subr.mxu0 0.0
    %772 = vmatpush2.msra.mxu0 0.0
    %773 = vmatprep.subr.mxu0 0.0
    %774 = vmatpush2.msra.mxu0 0.0
    %775 = vmatprep.subr.mxu0 0.0
    %776 = vmatpush2.msra.mxu0 0.0
    %777 = vmatprep.subr.mxu0 0.0
    %778 = vmatpush2.msra.mxu0 0.0
    %779 = vmatprep.subr.mxu0 0.0
    %780 = vmatpush2.msra.mxu0 0.0
    %781 = vmatprep.subr.mxu0 0.0
    %782 = vmatpush2.msra.mxu0 0.0
    %783 = vmatprep.subr.mxu0 0.0
    %784 = vmatpush2.msra.mxu0 0.0
    %785 = vmatprep.subr.mxu0 0.0
    %786 = vmatpush2.msra.mxu0 0.0
    %787 = vmatprep.subr.mxu0 0.0
    %788 = vmatpush2.msra.mxu0 0.0
    %789 = vmatprep.subr.mxu0 0.0
    %790 = vmatpush2.msra.mxu0 0.0
    %791 = vmatprep.subr.mxu0 0.0
    %792 = vmatpush2.msra.mxu0 0.0
    %793 = vmatprep.subr.mxu0 0.0
    %794 = vmatpush2.msra.mxu0 0.0
    %795 = vmatprep.subr.mxu0 0.0
    %796 = vmatpush2.msra.mxu0 0.0
    %797 = vmatprep.subr.mxu0 0.0
    %798 = vmatpush2.msra.mxu0 0.0
    %799 = vmatprep.subr.mxu0 0.0
    %800 = vmatpush2.msra.mxu0 0.0
    %801 = vmatprep.subr.mxu0 0.0
    %802 = vmatpush2.msra.mxu0 0.0
    %803 = vmatprep.mubr.f32.mxu0 0.0
    %804 = vmatmul.mubr.f32.gmra.mxu0 %v666
    %v805 = vpop.f32.mrf.mxu0
    %v806 = vadd.f32 %v383, %v805
    %v807 = vpop.f32.mrf.mxu0
    %808 = vdwg.mxu0
    %v809 = vadd.f32 %v342, %v806
    %v810 = vxor.u32 %v809, 2147483648
    %v811 = vmul.f32 %v810, 1.442695
    %v812 = vpow.pop %v811
    %v813 = vadd.f32 %v812, 1.0
    %v814 = vrcp.pop %v813
    %v815 = vmul.f32 1.0, %v814
    %817 = vrot.lane.b32.xlu0 %v806, 64
    %v818 = vpop.permute.xlu0 %817
    %v820 = vmul.f32 %v815, %v818
    %822 = vrot.lane.b32.xlu0 %v820, 64
    %v823 = vpop.permute.xlu0 %822
    %v825 = vadd.f32 %v342, %v823
    %v826 = vtanh.pop %v825
    %v827 = vsub.f32 1.0, %v815
    %829 = vrot.lane.b32.xlu0 %v826, 96
    %v830 = vpop.permute.xlu0 %829
    %v832 = vmul.f32 %v827, %v830
    %v833 = vmul.f32 %v815, %v662
    %v834 = vadd.f32 %v832, %v833
    %836 = vrot.lane.b32.xlu0 %v834, 96
    %v837 = vpop.permute.xlu0 %836
    %v838 = vsel %vm240, %v837, 0
    %840 = vmatprep.subr.mxu0 0.0
    %841 = vmatpush1.msra.mxu0 0.0
    %842 = vmatprep.subr.mxu0 0.0
    %843 = vmatpush1.msra.mxu0 0.0
    %844 = vmatprep.subr.mxu0 0.0
    %845 = vmatpush1.msra.mxu0 0.0
    %846 = vmatprep.subr.mxu0 0.0
    %847 = vmatpush1.msra.mxu0 0.0
    %848 = vmatprep.subr.mxu0 0.0
    %849 = vmatpush1.msra.mxu0 0.0
    %850 = vmatprep.subr.mxu0 0.0
    %851 = vmatpush1.msra.mxu0 0.0
    %852 = vmatprep.subr.mxu0 0.0
    %853 = vmatpush1.msra.mxu0 0.0
    %854 = vmatprep.subr.mxu0 0.0
    %855 = vmatpush1.msra.mxu0 0.0
    %856 = vmatprep.subr.mxu0 0.0
    %857 = vmatpush1.msra.mxu0 0.0
    %858 = vmatprep.subr.mxu0 0.0
    %859 = vmatpush1.msra.mxu0 0.0
    %860 = vmatprep.subr.mxu0 0.0
    %861 = vmatpush1.msra.mxu0 0.0
    %862 = vmatprep.subr.mxu0 0.0
    %863 = vmatpush1.msra.mxu0 0.0
    %864 = vmatprep.subr.mxu0 0.0
    %865 = vmatpush1.msra.mxu0 %v377
    %866 = vmatprep.subr.mxu0 0.0
    %867 = vmatpush1.msra.mxu0 %v376
    %868 = vmatprep.subr.mxu0 0.0
    %869 = vmatpush1.msra.mxu0 %v375
    %870 = vmatprep.subr.mxu0 0.0
    %871 = vmatpush1.msra.mxu0 %v374
    %872 = vmatprep.subr.mxu0 0.0
    %873 = vmatpush2.msra.mxu0 0.0
    %874 = vmatprep.subr.mxu0 0.0
    %875 = vmatpush2.msra.mxu0 0.0
    %876 = vmatprep.subr.mxu0 0.0
    %877 = vmatpush2.msra.mxu0 0.0
    %878 = vmatprep.subr.mxu0 0.0
    %879 = vmatpush2.msra.mxu0 0.0
    %880 = vmatprep.subr.mxu0 0.0
    %881 = vmatpush2.msra.mxu0 0.0
    %882 = vmatprep.subr.mxu0 0.0
    %883 = vmatpush2.msra.mxu0 0.0
    %884 = vmatprep.subr.mxu0 0.0
    %885 = vmatpush2.msra.mxu0 0.0
    %886 = vmatprep.subr.mxu0 0.0
    %887 = vmatpush2.msra.mxu0 0.0
    %888 = vmatprep.subr.mxu0 0.0
    %889 = vmatpush2.msra.mxu0 0.0
    %890 = vmatprep.subr.mxu0 0.0
    %891 = vmatpush2.msra.mxu0 0.0
    %892 = vmatprep.subr.mxu0 0.0
    %893 = vmatpush2.msra.mxu0 0.0
    %894 = vmatprep.subr.mxu0 0.0
    %895 = vmatpush2.msra.mxu0 0.0
    %896 = vmatprep.subr.mxu0 0.0
    %897 = vmatpush2.msra.mxu0 0.0
    %898 = vmatprep.subr.mxu0 0.0
    %899 = vmatpush2.msra.mxu0 0.0
    %900 = vmatprep.subr.mxu0 0.0
    %901 = vmatpush2.msra.mxu0 0.0
    %902 = vmatprep.subr.mxu0 0.0
    %903 = vmatpush2.msra.mxu0 0.0
    %904 = vmatprep.mubr.f32.mxu0 0.0
    %905 = vmatmul.mubr.f32.gmra.mxu0 %v838
    %v906 = vpop.f32.mrf.mxu0
    %v907 = vadd.f32 %v390, %v906
    %v908 = vpop.f32.mrf.mxu0
    %909 = vdwg.mxu0
    %910 = vst [vmem:[#allocation2 + $0x10] sm:$0xff] %v907
    %911 = vmatprep.subr.mxu0 0.0
    %912 = vmatpush1.msra.mxu0 0.0
    %913 = vmatprep.subr.mxu0 0.0
    %914 = vmatpush1.msra.mxu0 0.0
    %915 = vmatprep.subr.mxu0 0.0
    %916 = vmatpush1.msra.mxu0 0.0
    %917 = vmatprep.subr.mxu0 0.0
    %918 = vmatpush1.msra.mxu0 0.0
    %919 = vmatprep.subr.mxu0 0.0
    %920 = vmatpush1.msra.mxu0 0.0
    %921 = vmatprep.subr.mxu0 0.0
    %922 = vmatpush1.msra.mxu0 0.0
    %923 = vmatprep.subr.mxu0 0.0
    %924 = vmatpush1.msra.mxu0 0.0
    %925 = vmatprep.subr.mxu0 0.0
    %926 = vmatpush1.msra.mxu0 0.0
    %927 = vmatprep.subr.mxu0 0.0
    %928 = vmatpush1.msra.mxu0 0.0
    %929 = vmatprep.subr.mxu0 0.0
    %930 = vmatpush1.msra.mxu0 0.0
    %931 = vmatprep.subr.mxu0 0.0
    %932 = vmatpush1.msra.mxu0 0.0
    %933 = vmatprep.subr.mxu0 0.0
    %934 = vmatpush1.msra.mxu0 0.0
    %935 = vmatprep.subr.mxu0 0.0
    %936 = vmatpush1.msra.mxu0 %v373
    %937 = vmatprep.subr.mxu0 0.0
    %938 = vmatpush1.msra.mxu0 %v372
    %939 = vmatprep.subr.mxu0 0.0
    %940 = vmatpush1.msra.mxu0 %v371
    %941 = vmatprep.subr.mxu0 0.0
    %942 = vmatpush1.msra.mxu0 %v370
    %943 = vmatprep.subr.mxu0 0.0
    %944 = vmatpush2.msra.mxu0 0.0
    %945 = vmatprep.subr.mxu0 0.0
    %946 = vmatpush2.msra.mxu0 0.0
    %947 = vmatprep.subr.mxu0 0.0
    %948 = vmatpush2.msra.mxu0 0.0
    %949 = vmatprep.subr.mxu0 0.0
    %950 = vmatpush2.msra.mxu0 0.0
    %951 = vmatprep.subr.mxu0 0.0
    %952 = vmatpush2.msra.mxu0 0.0
    %953 = vmatprep.subr.mxu0 0.0
    %954 = vmatpush2.msra.mxu0 0.0
    %955 = vmatprep.subr.mxu0 0.0
    %956 = vmatpush2.msra.mxu0 0.0
    %957 = vmatprep.subr.mxu0 0.0
    %958 = vmatpush2.msra.mxu0 0.0
    %959 = vmatprep.subr.mxu0 0.0
    %960 = vmatpush2.msra.mxu0 0.0
    %961 = vmatprep.subr.mxu0 0.0
    %962 = vmatpush2.msra.mxu0 0.0
    %963 = vmatprep.subr.mxu0 0.0
    %964 = vmatpush2.msra.mxu0 0.0
    %965 = vmatprep.subr.mxu0 0.0
    %966 = vmatpush2.msra.mxu0 0.0
    %967 = vmatprep.subr.mxu0 0.0
    %968 = vmatpush2.msra.mxu0 0.0
    %969 = vmatprep.subr.mxu0 0.0
    %970 = vmatpush2.msra.mxu0 0.0
    %971 = vmatprep.subr.mxu0 0.0
    %972 = vmatpush2.msra.mxu0 0.0
    %973 = vmatprep.subr.mxu0 0.0
    %974 = vmatpush2.msra.mxu0 0.0
    %975 = vmatprep.mubr.f32.mxu0 0.0
    %976 = vmatmul.mubr.f32.gmra.mxu0 %v838
    %v977 = vpop.f32.mrf.mxu0
    %v978 = vadd.f32 %v383, %v977
    %v979 = vpop.f32.mrf.mxu0
    %980 = vdwg.mxu0
    %v981 = vadd.f32 %v347, %v978
    %v982 = vxor.u32 %v981, 2147483648
    %v983 = vmul.f32 %v982, 1.442695
    %v984 = vpow.pop %v983
    %v985 = vadd.f32 %v984, 1.0
    %v986 = vrcp.pop %v985
    %v987 = vmul.f32 1.0, %v986
    %989 = vrot.lane.b32.xlu0 %v978, 64
    %v990 = vpop.permute.xlu0 %989
    %v992 = vmul.f32 %v987, %v990
    %994 = vrot.lane.b32.xlu0 %v992, 64
    %v995 = vpop.permute.xlu0 %994
    %v997 = vadd.f32 %v347, %v995
    %v998 = vtanh.pop %v997
    %v999 = vsub.f32 1.0, %v987
    %1001 = vrot.lane.b32.xlu0 %v998, 96
    %v1002 = vpop.permute.xlu0 %1001
    %v1004 = vmul.f32 %v999, %v1002
    %v1005 = vmul.f32 %v987, %v834
    %v1006 = vadd.f32 %v1004, %v1005
    %1008 = vrot.lane.b32.xlu0 %v1006, 96
    %v1009 = vpop.permute.xlu0 %1008
    %v1010 = vsel %vm240, %v1009, 0
    %1012 = vmatprep.subr.mxu0 0.0
    %1013 = vmatpush1.msra.mxu0 0.0
    %1014 = vmatprep.subr.mxu0 0.0
    %1015 = vmatpush1.msra.mxu0 0.0
    %1016 = vmatprep.subr.mxu0 0.0
    %1017 = vmatpush1.msra.mxu0 0.0
    %1018 = vmatprep.subr.mxu0 0.0
    %1019 = vmatpush1.msra.mxu0 0.0
    %1020 = vmatprep.subr.mxu0 0.0
    %1021 = vmatpush1.msra.mxu0 0.0
    %1022 = vmatprep.subr.mxu0 0.0
    %1023 = vmatpush1.msra.mxu0 0.0
    %1024 = vmatprep.subr.mxu0 0.0
    %1025 = vmatpush1.msra.mxu0 0.0
    %1026 = vmatprep.subr.mxu0 0.0
    %1027 = vmatpush1.msra.mxu0 0.0
    %1028 = vmatprep.subr.mxu0 0.0
    %1029 = vmatpush1.msra.mxu0 0.0
    %1030 = vmatprep.subr.mxu0 0.0
    %1031 = vmatpush1.msra.mxu0 0.0
    %1032 = vmatprep.subr.mxu0 0.0
    %1033 = vmatpush1.msra.mxu0 0.0
    %1034 = vmatprep.subr.mxu0 0.0
    %1035 = vmatpush1.msra.mxu0 0.0
    %1036 = vmatprep.subr.mxu0 0.0
    %1037 = vmatpush1.msra.mxu0 %v377
    %1038 = vmatprep.subr.mxu0 0.0
    %1039 = vmatpush1.msra.mxu0 %v376
    %1040 = vmatprep.subr.mxu0 0.0
    %1041 = vmatpush1.msra.mxu0 %v375
    %1042 = vmatprep.subr.mxu0 0.0
    %1043 = vmatpush1.msra.mxu0 %v374
    %1044 = vmatprep.subr.mxu0 0.0
    %1045 = vmatpush2.msra.mxu0 0.0
    %1046 = vmatprep.subr.mxu0 0.0
    %1047 = vmatpush2.msra.mxu0 0.0
    %1048 = vmatprep.subr.mxu0 0.0
    %1049 = vmatpush2.msra.mxu0 0.0
    %1050 = vmatprep.subr.mxu0 0.0
    %1051 = vmatpush2.msra.mxu0 0.0
    %1052 = vmatprep.subr.mxu0 0.0
    %1053 = vmatpush2.msra.mxu0 0.0
    %1054 = vmatprep.subr.mxu0 0.0
    %1055 = vmatpush2.msra.mxu0 0.0
    %1056 = vmatprep.subr.mxu0 0.0
    %1057 = vmatpush2.msra.mxu0 0.0
    %1058 = vmatprep.subr.mxu0 0.0
    %1059 = vmatpush2.msra.mxu0 0.0
    %1060 = vmatprep.subr.mxu0 0.0
    %1061 = vmatpush2.msra.mxu0 0.0
    %1062 = vmatprep.subr.mxu0 0.0
    %1063 = vmatpush2.msra.mxu0 0.0
    %1064 = vmatprep.subr.mxu0 0.0
    %1065 = vmatpush2.msra.mxu0 0.0
    %1066 = vmatprep.subr.mxu0 0.0
    %1067 = vmatpush2.msra.mxu0 0.0
    %1068 = vmatprep.subr.mxu0 0.0
    %1069 = vmatpush2.msra.mxu0 0.0
    %1070 = vmatprep.subr.mxu0 0.0
    %1071 = vmatpush2.msra.mxu0 0.0
    %1072 = vmatprep.subr.mxu0 0.0
    %1073 = vmatpush2.msra.mxu0 0.0
    %1074 = vmatprep.subr.mxu0 0.0
    %1075 = vmatpush2.msra.mxu0 0.0
    %1076 = vmatprep.mubr.f32.mxu0 0.0
    %1077 = vmatmul.mubr.f32.gmra.mxu0 %v1010
    %v1078 = vpop.f32.mrf.mxu0
    %v1079 = vadd.f32 %v390, %v1078
    %v1080 = vpop.f32.mrf.mxu0
    %1081 = vdwg.mxu0
    %1082 = vst [vmem:[#allocation2 + $0x18] sm:$0xff] %v1079
    %1083 = vmatprep.subr.mxu0 0.0
    %1084 = vmatpush1.msra.mxu0 0.0
    %1085 = vmatprep.subr.mxu0 0.0
    %1086 = vmatpush1.msra.mxu0 0.0
    %1087 = vmatprep.subr.mxu0 0.0
    %1088 = vmatpush1.msra.mxu0 0.0
    %1089 = vmatprep.subr.mxu0 0.0
    %1090 = vmatpush1.msra.mxu0 0.0
    %1091 = vmatprep.subr.mxu0 0.0
    %1092 = vmatpush1.msra.mxu0 0.0
    %1093 = vmatprep.subr.mxu0 0.0
    %1094 = vmatpush1.msra.mxu0 0.0
    %1095 = vmatprep.subr.mxu0 0.0
    %1096 = vmatpush1.msra.mxu0 0.0
    %1097 = vmatprep.subr.mxu0 0.0
    %1098 = vmatpush1.msra.mxu0 0.0
    %1099 = vmatprep.subr.mxu0 0.0
    %1100 = vmatpush1.msra.mxu0 0.0
    %1101 = vmatprep.subr.mxu0 0.0
    %1102 = vmatpush1.msra.mxu0 0.0
    %1103 = vmatprep.subr.mxu0 0.0
    %1104 = vmatpush1.msra.mxu0 0.0
    %1105 = vmatprep.subr.mxu0 0.0
    %1106 = vmatpush1.msra.mxu0 0.0
    %1107 = vmatprep.subr.mxu0 0.0
    %1108 = vmatpush1.msra.mxu0 %v373
    %1109 = vmatprep.subr.mxu0 0.0
    %1110 = vmatpush1.msra.mxu0 %v372
    %1111 = vmatprep.subr.mxu0 0.0
    %1112 = vmatpush1.msra.mxu0 %v371
    %1113 = vmatprep.subr.mxu0 0.0
    %1114 = vmatpush1.msra.mxu0 %v370
    %1115 = vmatprep.subr.mxu0 0.0
    %1116 = vmatpush2.msra.mxu0 0.0
    %1117 = vmatprep.subr.mxu0 0.0
    %1118 = vmatpush2.msra.mxu0 0.0
    %1119 = vmatprep.subr.mxu0 0.0
    %1120 = vmatpush2.msra.mxu0 0.0
    %1121 = vmatprep.subr.mxu0 0.0
    %1122 = vmatpush2.msra.mxu0 0.0
    %1123 = vmatprep.subr.mxu0 0.0
    %1124 = vmatpush2.msra.mxu0 0.0
    %1125 = vmatprep.subr.mxu0 0.0
    %1126 = vmatpush2.msra.mxu0 0.0
    %1127 = vmatprep.subr.mxu0 0.0
    %1128 = vmatpush2.msra.mxu0 0.0
    %1129 = vmatprep.subr.mxu0 0.0
    %1130 = vmatpush2.msra.mxu0 0.0
    %1131 = vmatprep.subr.mxu0 0.0
    %1132 = vmatpush2.msra.mxu0 0.0
    %1133 = vmatprep.subr.mxu0 0.0
    %1134 = vmatpush2.msra.mxu0 0.0
    %1135 = vmatprep.subr.mxu0 0.0
    %1136 = vmatpush2.msra.mxu0 0.0
    %1137 = vmatprep.subr.mxu0 0.0
    %1138 = vmatpush2.msra.mxu0 0.0
    %1139 = vmatprep.subr.mxu0 0.0
    %1140 = vmatpush2.msra.mxu0 0.0
    %1141 = vmatprep.subr.mxu0 0.0
    %1142 = vmatpush2.msra.mxu0 0.0
    %1143 = vmatprep.subr.mxu0 0.0
    %1144 = vmatpush2.msra.mxu0 0.0
    %1145 = vmatprep.subr.mxu0 0.0
    %1146 = vmatpush2.msra.mxu0 0.0
    %1147 = vmatprep.mubr.f32.mxu0 0.0
    %1148 = vmatmul.mubr.f32.gmra.mxu0 %v1010
    %v1149 = vpop.f32.mrf.mxu0
    %v1150 = vadd.f32 %v383, %v1149
    %v1151 = vpop.f32.mrf.mxu0
    %1152 = vdwg.mxu0
    %v1153 = vadd.f32 %v352, %v1150
    %v1154 = vxor.u32 %v1153, 2147483648
    %v1155 = vmul.f32 %v1154, 1.442695
    %v1156 = vpow.pop %v1155
    %v1157 = vadd.f32 %v1156, 1.0
    %v1158 = vrcp.pop %v1157
    %v1159 = vmul.f32 1.0, %v1158
    %1161 = vrot.lane.b32.xlu0 %v1150, 64
    %v1162 = vpop.permute.xlu0 %1161
    %v1164 = vmul.f32 %v1159, %v1162
    %1166 = vrot.lane.b32.xlu0 %v1164, 64
    %v1167 = vpop.permute.xlu0 %1166
    %v1169 = vadd.f32 %v352, %v1167
    %v1170 = vtanh.pop %v1169
    %v1171 = vsub.f32 1.0, %v1159
    %1173 = vrot.lane.b32.xlu0 %v1170, 96
    %v1174 = vpop.permute.xlu0 %1173
    %v1176 = vmul.f32 %v1171, %v1174
    %v1177 = vmul.f32 %v1159, %v1006
    %v1178 = vadd.f32 %v1176, %v1177
    %1180 = vrot.lane.b32.xlu0 %v1178, 96
    %v1181 = vpop.permute.xlu0 %1180
    %v1182 = vsel %vm240, %v1181, 0
    %1184 = vmatprep.subr.mxu0 0.0
    %1185 = vmatpush1.msra.mxu0 0.0
    %1186 = vmatprep.subr.mxu0 0.0
    %1187 = vmatpush1.msra.mxu0 0.0
    %1188 = vmatprep.subr.mxu0 0.0
    %1189 = vmatpush1.msra.mxu0 0.0
    %1190 = vmatprep.subr.mxu0 0.0
    %1191 = vmatpush1.msra.mxu0 0.0
    %1192 = vmatprep.subr.mxu0 0.0
    %1193 = vmatpush1.msra.mxu0 0.0
    %1194 = vmatprep.subr.mxu0 0.0
    %1195 = vmatpush1.msra.mxu0 0.0
    %1196 = vmatprep.subr.mxu0 0.0
    %1197 = vmatpush1.msra.mxu0 0.0
    %1198 = vmatprep.subr.mxu0 0.0
    %1199 = vmatpush1.msra.mxu0 0.0
    %1200 = vmatprep.subr.mxu0 0.0
    %1201 = vmatpush1.msra.mxu0 0.0
    %1202 = vmatprep.subr.mxu0 0.0
    %1203 = vmatpush1.msra.mxu0 0.0
    %1204 = vmatprep.subr.mxu0 0.0
    %1205 = vmatpush1.msra.mxu0 0.0
    %1206 = vmatprep.subr.mxu0 0.0
    %1207 = vmatpush1.msra.mxu0 0.0
    %1208 = vmatprep.subr.mxu0 0.0
    %1209 = vmatpush1.msra.mxu0 %v377
    %1210 = vmatprep.subr.mxu0 0.0
    %1211 = vmatpush1.msra.mxu0 %v376
    %1212 = vmatprep.subr.mxu0 0.0
    %1213 = vmatpush1.msra.mxu0 %v375
    %1214 = vmatprep.subr.mxu0 0.0
    %1215 = vmatpush1.msra.mxu0 %v374
    %1216 = vmatprep.subr.mxu0 0.0
    %1217 = vmatpush2.msra.mxu0 0.0
    %1218 = vmatprep.subr.mxu0 0.0
    %1219 = vmatpush2.msra.mxu0 0.0
    %1220 = vmatprep.subr.mxu0 0.0
    %1221 = vmatpush2.msra.mxu0 0.0
    %1222 = vmatprep.subr.mxu0 0.0
    %1223 = vmatpush2.msra.mxu0 0.0
    %1224 = vmatprep.subr.mxu0 0.0
    %1225 = vmatpush2.msra.mxu0 0.0
    %1226 = vmatprep.subr.mxu0 0.0
    %1227 = vmatpush2.msra.mxu0 0.0
    %1228 = vmatprep.subr.mxu0 0.0
    %1229 = vmatpush2.msra.mxu0 0.0
    %1230 = vmatprep.subr.mxu0 0.0
    %1231 = vmatpush2.msra.mxu0 0.0
    %1232 = vmatprep.subr.mxu0 0.0
    %1233 = vmatpush2.msra.mxu0 0.0
    %1234 = vmatprep.subr.mxu0 0.0
    %1235 = vmatpush2.msra.mxu0 0.0
    %1236 = vmatprep.subr.mxu0 0.0
    %1237 = vmatpush2.msra.mxu0 0.0
    %1238 = vmatprep.subr.mxu0 0.0
    %1239 = vmatpush2.msra.mxu0 0.0
    %1240 = vmatprep.subr.mxu0 0.0
    %1241 = vmatpush2.msra.mxu0 0.0
    %1242 = vmatprep.subr.mxu0 0.0
    %1243 = vmatpush2.msra.mxu0 0.0
    %1244 = vmatprep.subr.mxu0 0.0
    %1245 = vmatpush2.msra.mxu0 0.0
    %1246 = vmatprep.subr.mxu0 0.0
    %1247 = vmatpush2.msra.mxu0 0.0
    %1248 = vmatprep.mubr.f32.mxu0 0.0
    %1249 = vmatmul.mubr.f32.gmra.mxu0 %v1182
    %v1250 = vpop.f32.mrf.mxu0
    %v1251 = vadd.f32 %v390, %v1250
    %v1252 = vpop.f32.mrf.mxu0
    %1253 = vdwg.mxu0
    %1254 = vst [vmem:[#allocation2 + $0x20] sm:$0xff] %v1251
    %1255 = vmatprep.subr.mxu0 0.0
    %1256 = vmatpush1.msra.mxu0 0.0
    %1257 = vmatprep.subr.mxu0 0.0
    %1258 = vmatpush1.msra.mxu0 0.0
    %1259 = vmatprep.subr.mxu0 0.0
    %1260 = vmatpush1.msra.mxu0 0.0
    %1261 = vmatprep.subr.mxu0 0.0
    %1262 = vmatpush1.msra.mxu0 0.0
    %1263 = vmatprep.subr.mxu0 0.0
    %1264 = vmatpush1.msra.mxu0 0.0
    %1265 = vmatprep.subr.mxu0 0.0
    %1266 = vmatpush1.msra.mxu0 0.0
    %1267 = vmatprep.subr.mxu0 0.0
    %1268 = vmatpush1.msra.mxu0 0.0
    %1269 = vmatprep.subr.mxu0 0.0
    %1270 = vmatpush1.msra.mxu0 0.0
    %1271 = vmatprep.subr.mxu0 0.0
    %1272 = vmatpush1.msra.mxu0 0.0
    %1273 = vmatprep.subr.mxu0 0.0
    %1274 = vmatpush1.msra.mxu0 0.0
    %1275 = vmatprep.subr.mxu0 0.0
    %1276 = vmatpush1.msra.mxu0 0.0
    %1277 = vmatprep.subr.mxu0 0.0
    %1278 = vmatpush1.msra.mxu0 0.0
    %1279 = vmatprep.subr.mxu0 0.0
    %1280 = vmatpush1.msra.mxu0 %v373
    %1281 = vmatprep.subr.mxu0 0.0
    %1282 = vmatpush1.msra.mxu0 %v372
    %1283 = vmatprep.subr.mxu0 0.0
    %1284 = vmatpush1.msra.mxu0 %v371
    %1285 = vmatprep.subr.mxu0 0.0
    %1286 = vmatpush1.msra.mxu0 %v370
    %1287 = vmatprep.subr.mxu0 0.0
    %1288 = vmatpush2.msra.mxu0 0.0
    %1289 = vmatprep.subr.mxu0 0.0
    %1290 = vmatpush2.msra.mxu0 0.0
    %1291 = vmatprep.subr.mxu0 0.0
    %1292 = vmatpush2.msra.mxu0 0.0
    %1293 = vmatprep.subr.mxu0 0.0
    %1294 = vmatpush2.msra.mxu0 0.0
    %1295 = vmatprep.subr.mxu0 0.0
    %1296 = vmatpush2.msra.mxu0 0.0
    %1297 = vmatprep.subr.mxu0 0.0
    %1298 = vmatpush2.msra.mxu0 0.0
    %1299 = vmatprep.subr.mxu0 0.0
    %1300 = vmatpush2.msra.mxu0 0.0
    %1301 = vmatprep.subr.mxu0 0.0
    %1302 = vmatpush2.msra.mxu0 0.0
    %1303 = vmatprep.subr.mxu0 0.0
    %1304 = vmatpush2.msra.mxu0 0.0
    %1305 = vmatprep.subr.mxu0 0.0
    %1306 = vmatpush2.msra.mxu0 0.0
    %1307 = vmatprep.subr.mxu0 0.0
    %1308 = vmatpush2.msra.mxu0 0.0
    %1309 = vmatprep.subr.mxu0 0.0
    %1310 = vmatpush2.msra.mxu0 0.0
    %1311 = vmatprep.subr.mxu0 0.0
    %1312 = vmatpush2.msra.mxu0 0.0
    %1313 = vmatprep.subr.mxu0 0.0
    %1314 = vmatpush2.msra.mxu0 0.0
    %1315 = vmatprep.subr.mxu0 0.0
    %1316 = vmatpush2.msra.mxu0 0.0
    %1317 = vmatprep.subr.mxu0 0.0
    %1318 = vmatpush2.msra.mxu0 0.0
    %1319 = vmatprep.mubr.f32.mxu0 0.0
    %1320 = vmatmul.mubr.f32.gmra.mxu0 %v1182
    %v1321 = vpop.f32.mrf.mxu0
    %v1322 = vadd.f32 %v383, %v1321
    %v1323 = vpop.f32.mrf.mxu0
    %1324 = vdwg.mxu0
    %v1325 = vadd.f32 %v357, %v1322
    %v1326 = vxor.u32 %v1325, 2147483648
    %v1327 = vmul.f32 %v1326, 1.442695
    %v1328 = vpow.pop %v1327
    %v1329 = vadd.f32 %v1328, 1.0
    %v1330 = vrcp.pop %v1329
    %v1331 = vmul.f32 1.0, %v1330
    %1333 = vrot.lane.b32.xlu0 %v1322, 64
    %v1334 = vpop.permute.xlu0 %1333
    %v1336 = vmul.f32 %v1331, %v1334
    %1338 = vrot.lane.b32.xlu0 %v1336, 64
    %v1339 = vpop.permute.xlu0 %1338
    %v1341 = vadd.f32 %v357, %v1339
    %v1342 = vtanh.pop %v1341
    %v1343 = vsub.f32 1.0, %v1331
    %1345 = vrot.lane.b32.xlu0 %v1342, 96
    %v1346 = vpop.permute.xlu0 %1345
    %v1348 = vmul.f32 %v1343, %v1346
    %v1349 = vmul.f32 %v1331, %v1178
    %v1350 = vadd.f32 %v1348, %v1349
    %1352 = vrot.lane.b32.xlu0 %v1350, 96
    %v1353 = vpop.permute.xlu0 %1352
    %v1354 = vsel %vm240, %v1353, 0
    %1356 = vmatprep.subr.mxu0 0.0
    %1357 = vmatpush1.msra.mxu0 0.0
    %1358 = vmatprep.subr.mxu0 0.0
    %1359 = vmatpush1.msra.mxu0 0.0
    %1360 = vmatprep.subr.mxu0 0.0
    %1361 = vmatpush1.msra.mxu0 0.0
    %1362 = vmatprep.subr.mxu0 0.0
    %1363 = vmatpush1.msra.mxu0 0.0
    %1364 = vmatprep.subr.mxu0 0.0
    %1365 = vmatpush1.msra.mxu0 0.0
    %1366 = vmatprep.subr.mxu0 0.0
    %1367 = vmatpush1.msra.mxu0 0.0
    %1368 = vmatprep.subr.mxu0 0.0
    %1369 = vmatpush1.msra.mxu0 0.0
    %1370 = vmatprep.subr.mxu0 0.0
    %1371 = vmatpush1.msra.mxu0 0.0
    %1372 = vmatprep.subr.mxu0 0.0
    %1373 = vmatpush1.msra.mxu0 0.0
    %1374 = vmatprep.subr.mxu0 0.0
    %1375 = vmatpush1.msra.mxu0 0.0
    %1376 = vmatprep.subr.mxu0 0.0
    %1377 = vmatpush1.msra.mxu0 0.0
    %1378 = vmatprep.subr.mxu0 0.0
    %1379 = vmatpush1.msra.mxu0 0.0
    %1380 = vmatprep.subr.mxu0 0.0
    %1381 = vmatpush1.msra.mxu0 %v377
    %1382 = vmatprep.subr.mxu0 0.0
    %1383 = vmatpush1.msra.mxu0 %v376
    %1384 = vmatprep.subr.mxu0 0.0
    %1385 = vmatpush1.msra.mxu0 %v375
    %1386 = vmatprep.subr.mxu0 0.0
    %1387 = vmatpush1.msra.mxu0 %v374
    %1388 = vmatprep.subr.mxu0 0.0
    %1389 = vmatpush2.msra.mxu0 0.0
    %1390 = vmatprep.subr.mxu0 0.0
    %1391 = vmatpush2.msra.mxu0 0.0
    %1392 = vmatprep.subr.mxu0 0.0
    %1393 = vmatpush2.msra.mxu0 0.0
    %1394 = vmatprep.subr.mxu0 0.0
    %1395 = vmatpush2.msra.mxu0 0.0
    %1396 = vmatprep.subr.mxu0 0.0
    %1397 = vmatpush2.msra.mxu0 0.0
    %1398 = vmatprep.subr.mxu0 0.0
    %1399 = vmatpush2.msra.mxu0 0.0
    %1400 = vmatprep.subr.mxu0 0.0
    %1401 = vmatpush2.msra.mxu0 0.0
    %1402 = vmatprep.subr.mxu0 0.0
    %1403 = vmatpush2.msra.mxu0 0.0
    %1404 = vmatprep.subr.mxu0 0.0
    %1405 = vmatpush2.msra.mxu0 0.0
    %1406 = vmatprep.subr.mxu0 0.0
    %1407 = vmatpush2.msra.mxu0 0.0
    %1408 = vmatprep.subr.mxu0 0.0
    %1409 = vmatpush2.msra.mxu0 0.0
    %1410 = vmatprep.subr.mxu0 0.0
    %1411 = vmatpush2.msra.mxu0 0.0
    %1412 = vmatprep.subr.mxu0 0.0
    %1413 = vmatpush2.msra.mxu0 0.0
    %1414 = vmatprep.subr.mxu0 0.0
    %1415 = vmatpush2.msra.mxu0 0.0
    %1416 = vmatprep.subr.mxu0 0.0
    %1417 = vmatpush2.msra.mxu0 0.0
    %1418 = vmatprep.subr.mxu0 0.0
    %1419 = vmatpush2.msra.mxu0 0.0
    %1420 = vmatprep.mubr.f32.mxu0 0.0
    %1421 = vmatmul.mubr.f32.gmra.mxu0 %v1354
    %v1422 = vpop.f32.mrf.mxu0
    %v1423 = vadd.f32 %v390, %v1422
    %v1424 = vpop.f32.mrf.mxu0
    %1425 = vdwg.mxu0
    %1426 = vst [vmem:[#allocation2 + $0x28] sm:$0xff] %v1423
    %1427 = vmatprep.subr.mxu0 0.0
    %1428 = vmatpush1.msra.mxu0 0.0
    %1429 = vmatprep.subr.mxu0 0.0
    %1430 = vmatpush1.msra.mxu0 0.0
    %1431 = vmatprep.subr.mxu0 0.0
    %1432 = vmatpush1.msra.mxu0 0.0
    %1433 = vmatprep.subr.mxu0 0.0
    %1434 = vmatpush1.msra.mxu0 0.0
    %1435 = vmatprep.subr.mxu0 0.0
    %1436 = vmatpush1.msra.mxu0 0.0
    %1437 = vmatprep.subr.mxu0 0.0
    %1438 = vmatpush1.msra.mxu0 0.0
    %1439 = vmatprep.subr.mxu0 0.0
    %1440 = vmatpush1.msra.mxu0 0.0
    %1441 = vmatprep.subr.mxu0 0.0
    %1442 = vmatpush1.msra.mxu0 0.0
    %1443 = vmatprep.subr.mxu0 0.0
    %1444 = vmatpush1.msra.mxu0 0.0
    %1445 = vmatprep.subr.mxu0 0.0
    %1446 = vmatpush1.msra.mxu0 0.0
    %1447 = vmatprep.subr.mxu0 0.0
    %1448 = vmatpush1.msra.mxu0 0.0
    %1449 = vmatprep.subr.mxu0 0.0
    %1450 = vmatpush1.msra.mxu0 0.0
    %1451 = vmatprep.subr.mxu0 0.0
    %1452 = vmatpush1.msra.mxu0 %v373
    %1453 = vmatprep.subr.mxu0 0.0
    %1454 = vmatpush1.msra.mxu0 %v372
    %1455 = vmatprep.subr.mxu0 0.0
    %1456 = vmatpush1.msra.mxu0 %v371
    %1457 = vmatprep.subr.mxu0 0.0
    %1458 = vmatpush1.msra.mxu0 %v370
    %1459 = vmatprep.subr.mxu0 0.0
    %1460 = vmatpush2.msra.mxu0 0.0
    %1461 = vmatprep.subr.mxu0 0.0
    %1462 = vmatpush2.msra.mxu0 0.0
    %1463 = vmatprep.subr.mxu0 0.0
    %1464 = vmatpush2.msra.mxu0 0.0
    %1465 = vmatprep.subr.mxu0 0.0
    %1466 = vmatpush2.msra.mxu0 0.0
    %1467 = vmatprep.subr.mxu0 0.0
    %1468 = vmatpush2.msra.mxu0 0.0
    %1469 = vmatprep.subr.mxu0 0.0
    %1470 = vmatpush2.msra.mxu0 0.0
    %1471 = vmatprep.subr.mxu0 0.0
    %1472 = vmatpush2.msra.mxu0 0.0
    %1473 = vmatprep.subr.mxu0 0.0
    %1474 = vmatpush2.msra.mxu0 0.0
    %1475 = vmatprep.subr.mxu0 0.0
    %1476 = vmatpush2.msra.mxu0 0.0
    %1477 = vmatprep.subr.mxu0 0.0
    %1478 = vmatpush2.msra.mxu0 0.0
    %1479 = vmatprep.subr.mxu0 0.0
    %1480 = vmatpush2.msra.mxu0 0.0
    %1481 = vmatprep.subr.mxu0 0.0
    %1482 = vmatpush2.msra.mxu0 0.0
    %1483 = vmatprep.subr.mxu0 0.0
    %1484 = vmatpush2.msra.mxu0 0.0
    %1485 = vmatprep.subr.mxu0 0.0
    %1486 = vmatpush2.msra.mxu0 0.0
    %1487 = vmatprep.subr.mxu0 0.0
    %1488 = vmatpush2.msra.mxu0 0.0
    %1489 = vmatprep.subr.mxu0 0.0
    %1490 = vmatpush2.msra.mxu0 0.0
    %1491 = vmatprep.mubr.f32.mxu0 0.0
    %1492 = vmatmul.mubr.f32.gmra.mxu0 %v1354
    %v1493 = vpop.f32.mrf.mxu0
    %v1494 = vadd.f32 %v383, %v1493
    %v1495 = vpop.f32.mrf.mxu0
    %1496 = vdwg.mxu0
    %v1497 = vadd.f32 %v362, %v1494
    %v1498 = vxor.u32 %v1497, 2147483648
    %v1499 = vmul.f32 %v1498, 1.442695
    %v1500 = vpow.pop %v1499
    %v1501 = vadd.f32 %v1500, 1.0
    %v1502 = vrcp.pop %v1501
    %v1503 = vmul.f32 1.0, %v1502
    %1505 = vrot.lane.b32.xlu0 %v1494, 64
    %v1506 = vpop.permute.xlu0 %1505
    %v1508 = vmul.f32 %v1503, %v1506
    %1510 = vrot.lane.b32.xlu0 %v1508, 64
    %v1511 = vpop.permute.xlu0 %1510
    %v1513 = vadd.f32 %v362, %v1511
    %v1514 = vtanh.pop %v1513
    %v1515 = vsub.f32 1.0, %v1503
    %1517 = vrot.lane.b32.xlu0 %v1514, 96
    %v1518 = vpop.permute.xlu0 %1517
    %v1520 = vmul.f32 %v1515, %v1518
    %v1521 = vmul.f32 %v1503, %v1350
    %v1522 = vadd.f32 %v1520, %v1521
    %1524 = vrot.lane.b32.xlu0 %v1522, 96
    %v1525 = vpop.permute.xlu0 %1524
    %v1526 = vsel %vm240, %v1525, 0
    %1528 = vmatprep.subr.mxu0 0.0
    %1529 = vmatpush1.msra.mxu0 0.0
    %1530 = vmatprep.subr.mxu0 0.0
    %1531 = vmatpush1.msra.mxu0 0.0
    %1532 = vmatprep.subr.mxu0 0.0
    %1533 = vmatpush1.msra.mxu0 0.0
    %1534 = vmatprep.subr.mxu0 0.0
    %1535 = vmatpush1.msra.mxu0 0.0
    %1536 = vmatprep.subr.mxu0 0.0
    %1537 = vmatpush1.msra.mxu0 0.0
    %1538 = vmatprep.subr.mxu0 0.0
    %1539 = vmatpush1.msra.mxu0 0.0
    %1540 = vmatprep.subr.mxu0 0.0
    %1541 = vmatpush1.msra.mxu0 0.0
    %1542 = vmatprep.subr.mxu0 0.0
    %1543 = vmatpush1.msra.mxu0 0.0
    %1544 = vmatprep.subr.mxu0 0.0
    %1545 = vmatpush1.msra.mxu0 0.0
    %1546 = vmatprep.subr.mxu0 0.0
    %1547 = vmatpush1.msra.mxu0 0.0
    %1548 = vmatprep.subr.mxu0 0.0
    %1549 = vmatpush1.msra.mxu0 0.0
    %1550 = vmatprep.subr.mxu0 0.0
    %1551 = vmatpush1.msra.mxu0 0.0
    %1552 = vmatprep.subr.mxu0 0.0
    %1553 = vmatpush1.msra.mxu0 %v377
    %1554 = vmatprep.subr.mxu0 0.0
    %1555 = vmatpush1.msra.mxu0 %v376
    %1556 = vmatprep.subr.mxu0 0.0
    %1557 = vmatpush1.msra.mxu0 %v375
    %1558 = vmatprep.subr.mxu0 0.0
    %1559 = vmatpush1.msra.mxu0 %v374
    %1560 = vmatprep.subr.mxu0 0.0
    %1561 = vmatpush2.msra.mxu0 0.0
    %1562 = vmatprep.subr.mxu0 0.0
    %1563 = vmatpush2.msra.mxu0 0.0
    %1564 = vmatprep.subr.mxu0 0.0
    %1565 = vmatpush2.msra.mxu0 0.0
    %1566 = vmatprep.subr.mxu0 0.0
    %1567 = vmatpush2.msra.mxu0 0.0
    %1568 = vmatprep.subr.mxu0 0.0
    %1569 = vmatpush2.msra.mxu0 0.0
    %1570 = vmatprep.subr.mxu0 0.0
    %1571 = vmatpush2.msra.mxu0 0.0
    %1572 = vmatprep.subr.mxu0 0.0
    %1573 = vmatpush2.msra.mxu0 0.0
    %1574 = vmatprep.subr.mxu0 0.0
    %1575 = vmatpush2.msra.mxu0 0.0
    %1576 = vmatprep.subr.mxu0 0.0
    %1577 = vmatpush2.msra.mxu0 0.0
    %1578 = vmatprep.subr.mxu0 0.0
    %1579 = vmatpush2.msra.mxu0 0.0
    %1580 = vmatprep.subr.mxu0 0.0
    %1581 = vmatpush2.msra.mxu0 0.0
    %1582 = vmatprep.subr.mxu0 0.0
    %1583 = vmatpush2.msra.mxu0 0.0
    %1584 = vmatprep.subr.mxu0 0.0
    %1585 = vmatpush2.msra.mxu0 0.0
    %1586 = vmatprep.subr.mxu0 0.0
    %1587 = vmatpush2.msra.mxu0 0.0
    %1588 = vmatprep.subr.mxu0 0.0
    %1589 = vmatpush2.msra.mxu0 0.0
    %1590 = vmatprep.subr.mxu0 0.0
    %1591 = vmatpush2.msra.mxu0 0.0
    %1592 = vmatprep.mubr.f32.mxu0 0.0
    %1593 = vmatmul.mubr.f32.gmra.mxu0 %v1526
    %v1594 = vpop.f32.mrf.mxu0
    %v1595 = vadd.f32 %v390, %v1594
    %v1596 = vpop.f32.mrf.mxu0
    %1597 = vdwg.mxu0
    %1598 = vst [vmem:[#allocation2 + $0x30] sm:$0xff] %v1595
    %1599 = vmatprep.subr.mxu0 0.0
    %1600 = vmatpush1.msra.mxu0 0.0
    %1601 = vmatprep.subr.mxu0 0.0
    %1602 = vmatpush1.msra.mxu0 0.0
    %1603 = vmatprep.subr.mxu0 0.0
    %1604 = vmatpush1.msra.mxu0 0.0
    %1605 = vmatprep.subr.mxu0 0.0
    %1606 = vmatpush1.msra.mxu0 0.0
    %1607 = vmatprep.subr.mxu0 0.0
    %1608 = vmatpush1.msra.mxu0 0.0
    %1609 = vmatprep.subr.mxu0 0.0
    %1610 = vmatpush1.msra.mxu0 0.0
    %1611 = vmatprep.subr.mxu0 0.0
    %1612 = vmatpush1.msra.mxu0 0.0
    %1613 = vmatprep.subr.mxu0 0.0
    %1614 = vmatpush1.msra.mxu0 0.0
    %1615 = vmatprep.subr.mxu0 0.0
    %1616 = vmatpush1.msra.mxu0 0.0
    %1617 = vmatprep.subr.mxu0 0.0
    %1618 = vmatpush1.msra.mxu0 0.0
    %1619 = vmatprep.subr.mxu0 0.0
    %1620 = vmatpush1.msra.mxu0 0.0
    %1621 = vmatprep.subr.mxu0 0.0
    %1622 = vmatpush1.msra.mxu0 0.0
    %1623 = vmatprep.subr.mxu0 0.0
    %1624 = vmatpush1.msra.mxu0 %v373
    %1625 = vmatprep.subr.mxu0 0.0
    %1626 = vmatpush1.msra.mxu0 %v372
    %1627 = vmatprep.subr.mxu0 0.0
    %1628 = vmatpush1.msra.mxu0 %v371
    %1629 = vmatprep.subr.mxu0 0.0
    %1630 = vmatpush1.msra.mxu0 %v370
    %1631 = vmatprep.subr.mxu0 0.0
    %1632 = vmatpush2.msra.mxu0 0.0
    %1633 = vmatprep.subr.mxu0 0.0
    %1634 = vmatpush2.msra.mxu0 0.0
    %1635 = vmatprep.subr.mxu0 0.0
    %1636 = vmatpush2.msra.mxu0 0.0
    %1637 = vmatprep.subr.mxu0 0.0
    %1638 = vmatpush2.msra.mxu0 0.0
    %1639 = vmatprep.subr.mxu0 0.0
    %1640 = vmatpush2.msra.mxu0 0.0
    %1641 = vmatprep.subr.mxu0 0.0
    %1642 = vmatpush2.msra.mxu0 0.0
    %1643 = vmatprep.subr.mxu0 0.0
    %1644 = vmatpush2.msra.mxu0 0.0
    %1645 = vmatprep.subr.mxu0 0.0
    %1646 = vmatpush2.msra.mxu0 0.0
    %1647 = vmatprep.subr.mxu0 0.0
    %1648 = vmatpush2.msra.mxu0 0.0
    %1649 = vmatprep.subr.mxu0 0.0
    %1650 = vmatpush2.msra.mxu0 0.0
    %1651 = vmatprep.subr.mxu0 0.0
    %1652 = vmatpush2.msra.mxu0 0.0
    %1653 = vmatprep.subr.mxu0 0.0
    %1654 = vmatpush2.msra.mxu0 0.0
    %1655 = vmatprep.subr.mxu0 0.0
    %1656 = vmatpush2.msra.mxu0 0.0
    %1657 = vmatprep.subr.mxu0 0.0
    %1658 = vmatpush2.msra.mxu0 0.0
    %1659 = vmatprep.subr.mxu0 0.0
    %1660 = vmatpush2.msra.mxu0 0.0
    %1661 = vmatprep.subr.mxu0 0.0
    %1662 = vmatpush2.msra.mxu0 0.0
    %1663 = vmatprep.mubr.f32.mxu0 0.0
    %1664 = vmatmul.mubr.f32.gmra.mxu0 %v1526
    %v1665 = vpop.f32.mrf.mxu0
    %v1666 = vadd.f32 %v383, %v1665
    %v1667 = vpop.f32.mrf.mxu0
    %1668 = vdwg.mxu0
    %v1669 = vadd.f32 %v367, %v1666
    %v1670 = vxor.u32 %v1669, 2147483648
    %v1671 = vmul.f32 %v1670, 1.442695
    %v1672 = vpow.pop %v1671
    %v1673 = vadd.f32 %v1672, 1.0
    %v1674 = vrcp.pop %v1673
    %v1675 = vmul.f32 1.0, %v1674
    %1677 = vrot.lane.b32.xlu0 %v1666, 64
    %v1678 = vpop.permute.xlu0 %1677
    %v1680 = vmul.f32 %v1675, %v1678
    %1682 = vrot.lane.b32.xlu0 %v1680, 64
    %v1683 = vpop.permute.xlu0 %1682
    %v1685 = vadd.f32 %v367, %v1683
    %v1686 = vtanh.pop %v1685
    %v1687 = vsub.f32 1.0, %v1675
    %1689 = vrot.lane.b32.xlu0 %v1686, 96
    %v1690 = vpop.permute.xlu0 %1689
    %v1692 = vmul.f32 %v1687, %v1690
    %v1693 = vmul.f32 %v1675, %v1522
    %v1694 = vadd.f32 %v1692, %v1693
    %1696 = vrot.lane.b32.xlu0 %v1694, 96
    %v1697 = vpop.permute.xlu0 %1696
    %v1698 = vsel %vm240, %v1697, 0
    %1700 = vmatprep.subr.mxu0 0.0
    %1701 = vmatpush1.msra.mxu0 0.0
    %1702 = vmatprep.subr.mxu0 0.0
    %1703 = vmatpush1.msra.mxu0 0.0
    %1704 = vmatprep.subr.mxu0 0.0
    %1705 = vmatpush1.msra.mxu0 0.0
    %1706 = vmatprep.subr.mxu0 0.0
    %1707 = vmatpush1.msra.mxu0 0.0
    %1708 = vmatprep.subr.mxu0 0.0
    %1709 = vmatpush1.msra.mxu0 0.0
    %1710 = vmatprep.subr.mxu0 0.0
    %1711 = vmatpush1.msra.mxu0 0.0
    %1712 = vmatprep.subr.mxu0 0.0
    %1713 = vmatpush1.msra.mxu0 0.0
    %1714 = vmatprep.subr.mxu0 0.0
    %1715 = vmatpush1.msra.mxu0 0.0
    %1716 = vmatprep.subr.mxu0 0.0
    %1717 = vmatpush1.msra.mxu0 0.0
    %1718 = vmatprep.subr.mxu0 0.0
    %1719 = vmatpush1.msra.mxu0 0.0
    %1720 = vmatprep.subr.mxu0 0.0
    %1721 = vmatpush1.msra.mxu0 0.0
    %1722 = vmatprep.subr.mxu0 0.0
    %1723 = vmatpush1.msra.mxu0 0.0
    %1724 = vmatprep.subr.mxu0 0.0
    %1725 = vmatpush1.msra.mxu0 %v377
    %1726 = vmatprep.subr.mxu0 0.0
    %1727 = vmatpush1.msra.mxu0 %v376
    %1728 = vmatprep.subr.mxu0 0.0
    %1729 = vmatpush1.msra.mxu0 %v375
    %1730 = vmatprep.subr.mxu0 0.0
    %1731 = vmatpush1.msra.mxu0 %v374
    %1732 = vmatprep.subr.mxu0 0.0
    %1733 = vmatpush2.msra.mxu0 0.0
    %1734 = vmatprep.subr.mxu0 0.0
    %1735 = vmatpush2.msra.mxu0 0.0
    %1736 = vmatprep.subr.mxu0 0.0
    %1737 = vmatpush2.msra.mxu0 0.0
    %1738 = vmatprep.subr.mxu0 0.0
    %1739 = vmatpush2.msra.mxu0 0.0
    %1740 = vmatprep.subr.mxu0 0.0
    %1741 = vmatpush2.msra.mxu0 0.0
    %1742 = vmatprep.subr.mxu0 0.0
    %1743 = vmatpush2.msra.mxu0 0.0
    %1744 = vmatprep.subr.mxu0 0.0
    %1745 = vmatpush2.msra.mxu0 0.0
    %1746 = vmatprep.subr.mxu0 0.0
    %1747 = vmatpush2.msra.mxu0 0.0
    %1748 = vmatprep.subr.mxu0 0.0
    %1749 = vmatpush2.msra.mxu0 0.0
    %1750 = vmatprep.subr.mxu0 0.0
    %1751 = vmatpush2.msra.mxu0 0.0
    %1752 = vmatprep.subr.mxu0 0.0
    %1753 = vmatpush2.msra.mxu0 0.0
    %1754 = vmatprep.subr.mxu0 0.0
    %1755 = vmatpush2.msra.mxu0 0.0
    %1756 = vmatprep.subr.mxu0 0.0
    %1757 = vmatpush2.msra.mxu0 0.0
    %1758 = vmatprep.subr.mxu0 0.0
    %1759 = vmatpush2.msra.mxu0 0.0
    %1760 = vmatprep.subr.mxu0 0.0
    %1761 = vmatpush2.msra.mxu0 0.0
    %1762 = vmatprep.subr.mxu0 0.0
    %1763 = vmatpush2.msra.mxu0 0.0
    %1764 = vmatprep.mubr.f32.mxu0 0.0
    %1765 = vmatmul.mubr.f32.gmra.mxu0 %v1698
    %v1766 = vpop.f32.mrf.mxu0
    %v1767 = vadd.f32 %v390, %v1766
    %v1768 = vpop.f32.mrf.mxu0
    %1769 = vdwg.mxu0
    %1770 = vst [vmem:[#allocation2 + $0x38] sm:$0xff] %v1767
    // Predicated region
    $region34: #{tpu_custom_call.1} parent=1 // pred_check
      _
    $region35: #{tpu_custom_call.1} parent=1 // pred_check_branch
      %1772 = sbr.rel (0) target = $region37
    $region36: #{tpu_custom_call.1} parent=1 // pred_region
      %s1774 = ssub.s32 1024, 1024
      %1775 = vsyncadd [#allocation3], %s1774
      %s1777 = sshll.u32 [#allocation2], 4
      %s1778 = int_to_ptr.vmem [resolvable:$true] %s1777
      %1780 = dma.vmem_to_hbm [thread:$0]  %s1778, 1024, %s8, [#allocation3]
    $region37: #{tpu_custom_call.1} parent=1 // pred_fallthru
      _
    // Predicated region
    $region38: #{tpu_custom_call.1} parent=1 // pred_check
      _
    $region39: #{tpu_custom_call.1} parent=1 // pred_check_branch
      %1782 = sbr.rel (0) target = $region41
    $region40: #{tpu_custom_call.1} parent=1 // pred_region
      %1783 = dma.done [#allocation3], 1024
    $region41: #{tpu_custom_call.1} parent=1 // pred_fallthru
      _
    %1784 = vsyncpa [#allocation3], 1

</llo_original>
